<compile_context>
chip_gen: v7x
topology: tpu7x:2x2x1
jax: 0.10.0
libtpu: 0.0.40
codegen_flags: <defaults>
</compile_context>

<pallas_src>
import functools

import jax
import jax.numpy as jnp
import numpy as np
from jax.experimental import pallas as pl
from jax.experimental.pallas import tpu as pltpu

_MIB = 1024 * 1024
_ROW_QUANTUM = 1024            # rows per tile quantum: lcm of sublane packing (8/16/32) and 128 lanes
_DEFAULT_TILE_R = 16384        # large default tile; clamped by VMEM budget and row count below
_DEFAULT_MIN_ROWS_FOR_PALLAS = 4096

_LANE_DENSE_OK = True          # capability cache for the lane-dense output relayout


def _round_up(x: int, m: int) -> int:
    return ((x + m - 1) // m) * m


@functools.lru_cache(maxsize=None)
def _vmem_limit_bytes() -> int:
    """Generation-aware scoped-VMEM limit (v5e/v6e -> 64 MiB, v7x -> ~48 MiB)."""
    cap = None
    try:
        info = pltpu.get_tpu_info()
        cap = getattr(info, "vmem_capacity_bytes", None)
    except Exception:
        cap = None
    if not cap:
        cap = 64 * _MIB            # conservative (v7x-sized) fallback
    return int(max(32 * _MIB, min(64 * _MIB, int(cap) * 3 // 4)))


def _pick_tile_r(rows: int, in_itemsize: int, tile_r) -> int:
    """Pick a row-tile size: big, VMEM-budgeted, sublane/lane aligned, <= rows."""
    if tile_r is None:
        tile_r = _DEFAULT_TILE_R
    tile_r = max(_ROW_QUANTUM, _round_up(int(tile_r), _ROW_QUANTUM))
    # VMEM per grid step (worst case = lane-narrow fallback output):
    #   2 double-buffered input blocks (atoms lane-padded to 128) +
    #   2 output blocks (also 128-lane padded, f32) per row.
    per_row = 2 * 128 * (in_itemsize + 4)
    budget = max(_ROW_QUANTUM * per_row, _vmem_limit_bytes() - 8 * _MIB)
    tile_r = min(tile_r, max(_ROW_QUANTUM, (budget // per_row) // _ROW_QUANTUM * _ROW_QUANTUM))
    # Never let a block span more rows than the input has (avoids block > array).
    if rows >= _ROW_QUANTUM:
        tile_r = min(tile_r, (rows // _ROW_QUANTUM) * _ROW_QUANTUM)
    else:
        tile_r = _ROW_QUANTUM
    return tile_r


# --------------------------------------------------------------------------- kernels


@functools.lru_cache(maxsize=None)
def _make_expectation_kernel(v_min: float, delta_z: float):
    """q = sum(p * z, -1), z generated in-kernel as v_min + i*delta_z (f32 accumulation)."""

    def kernel(prob_ref, out_ref):
        _, a = prob_ref.shape
        idx = jax.lax.broadcasted_iota(jnp.int32, (1, a), 1).astype(jnp.float32)
        z = v_min + delta_z * idx                                   # (1, a) f32
        p = prob_ref[...].astype(jnp.float32)                       # (tile_r, a) f32
        if out_ref.shape[-1] == 1:
            # Lane-narrow fallback layout (tile_r, 1): masked stores but always lowers.
            out_ref[...] = jnp.sum(p * z, axis=-1, keepdims=True).astype(out_ref.dtype)
        else:
            # Lane-dense layout (tile_r//128, 128): dense stores, tiny output buffers.
            sub, lanes = out_ref.shape
            p3 = p.reshape(sub, lanes, a)                           # free vreg regrouping
            out_ref[...] = jnp.sum(p3 * z, axis=-1).astype(out_ref.dtype)

    return kernel


@functools.lru_cache(maxsize=None)
def _make_fused_softmax_expectation_kernel(v_min: float, delta_z: float):
    """q = sum(softmax(logits) * z, -1) in a single HBM pass (probs never materialized)."""

    def kernel(logits_ref, out_ref):
        _, a = logits_ref.shape
        idx = jax.lax.broadcasted_iota(jnp.int32, (1, a), 1).astype(jnp.float32)
        z = v_min + delta_z * idx
        x = logits_ref[...].astype(jnp.float32)
        m = jnp.max(x, axis=-1, keepdims=True)
        e = jnp.exp(x - m)                                          # EUP
        if out_ref.shape[-1] == 1:
            s = jnp.sum(e, axis=-1, keepdims=True)
            q = jnp.sum(e * z, axis=-1, keepdims=True) / s          # exact divide (precision)
            out_ref[...] = q.astype(out_ref.dtype)
        else:
            sub, lanes = out_ref.shape
            e3 = e.reshape(sub, lanes, a)
            q = jnp.sum(e3 * z, axis=-1) / jnp.sum(e3, axis=-1)
            out_ref[...] = q.astype(out_ref.dtype)

    return kernel


# --------------------------------------------------------------------------- launcher


def _run_rowwise(kernel, x2d, out_dtype, tile_r, cost_estimate, lane_dense):
    rows, num_atoms = x2d.shape

    if rows < tile_r:
        # Only inputs smaller than one 1024-row tile get padded (cheap); large
        # misaligned inputs use a partial last block instead (no extra HBM pass).
        x2d = jnp.pad(x2d, ((0, tile_r - rows), (0, 0)))

    num_tiles = pl.cdiv(rows, tile_r)
    rows_pad = num_tiles * tile_r

    if lane_dense:
        out_shape = jax.ShapeDtypeStruct((rows_pad // 128, 128), out_dtype)
        out_spec = pl.BlockSpec((tile_r // 128, 128), lambda i: (i, 0))
    else:
        out_shape = jax.ShapeDtypeStruct((rows_pad, 1), out_dtype)
        out_spec = pl.BlockSpec((tile_r, 1), lambda i: (i, 0))

    out = pl.pallas_call(
        kernel,
        out_shape=out_shape,
        grid_spec=pl.GridSpec(
            grid=(num_tiles,),
            in_specs=[
                # Last block dim equals the full array dim (num_atoms) -> (8,128) rule
                # satisfied; tile_r is a multiple of 1024 (covers f32/bf16/int8 packing).
                pl.BlockSpec((tile_r, num_atoms), lambda i: (i, 0)),
            ],
            out_specs=out_spec,
        ),
        compiler_params=pltpu.CompilerParams(
            # Row tiles are independent.
            # TODO(synk): on v7x, verify both TensorCores engage under "parallel"; if
            # not, switch this axis to pltpu.CORE_PARALLEL.
            dimension_semantics=("parallel",),
            vmem_limit_bytes=_vmem_limit_bytes(),
        ),
        cost_estimate=cost_estimate,
    )(x2d)

    return out.reshape(-1)[:rows]


def _run_rowwise_auto(kernel, x2d, out_dtype, tile_r, cost_estimate):
    """Try the lane-dense output layout; fall back to lane-narrow if Mosaic rejects
    the in-kernel column->lane relayout.  (Fallback triggers on eager calls, as here.)"""
    global _LANE_DENSE_OK
    if _LANE_DENSE_OK:
        try:
            return _run_rowwise(kernel, x2d, out_dtype, tile_r, cost_estimate, True)
        except Exception:
            _LANE_DENSE_OK = False
    return _run_rowwise(kernel, x2d, out_dtype, tile_r, cost_estimate, False)


# --------------------------------------------------------------------------- wrappers


def q_values_multi_dim(probabilities, v_min, v_max, num_atoms=None, *,
                       tile_r=None, min_rows_for_pallas=_DEFAULT_MIN_ROWS_FOR_PALLAS):
    """probabilities: [..., num_atoms] -> q-values of shape [...] (stacked)."""
    atoms = probabilities.shape[-1]
    if num_atoms is not None and int(num_atoms) != atoms:
        raise ValueError(f"last dim {atoms} != configured num_atoms {num_atoms}")
    delta_z = (float(v_max) - float(v_min)) / (atoms - 1) if atoms > 1 else 0.0
    rows = int(np.prod(probabilities.shape[:-1])) if probabilities.ndim > 1 else 1
    out_dtype = jnp.promote_types(probabilities.dtype, jnp.float32)

    if rows < min_rows_for_pallas:
        # Small batches: the pallas_call launch + DMA setup dominates; let XLA fuse.
        z = (float(v_min) + delta_z * jnp.arange(atoms, dtype=jnp.float32)).astype(out_dtype)
        return jnp.sum(probabilities.astype(out_dtype) * z, axis=-1)

    x2d = probabilities.reshape(rows, atoms)
    tile = _pick_tile_r(rows, x2d.dtype.itemsize, tile_r)
    cost = pl.CostEstimate(
        flops=2 * rows * atoms,
        transcendentals=0,
        bytes_accessed=rows * atoms * x2d.dtype.itemsize + rows * jnp.dtype(out_dtype).itemsize,
    )
    kernel = _make_expectation_kernel(float(v_min), float(delta_z))
    q = _run_rowwise_auto(kernel, x2d, out_dtype, tile, cost)
    return q.reshape(probabilities.shape[:-1])


def q_values_from_logits_fused(logits, v_min, v_max, num_atoms=None, *,
                               tile_r=None, min_rows_for_pallas=_DEFAULT_MIN_ROWS_FOR_PALLAS):
    """Fused softmax(atoms) + expectation: preferred path when the caller holds logits."""
    atoms = logits.shape[-1]
    if num_atoms is not None and int(num_atoms) != atoms:
        raise ValueError(f"last dim {atoms} != configured num_atoms {num_atoms}")
    delta_z = (float(v_max) - float(v_min)) / (atoms - 1) if atoms > 1 else 0.0
    rows = int(np.prod(logits.shape[:-1])) if logits.ndim > 1 else 1
    out_dtype = jnp.promote_types(logits.dtype, jnp.float32)

    if rows < min_rows_for_pallas:
        z = float(v_min) + delta_z * jnp.arange(atoms, dtype=jnp.float32)
        p = jax.nn.softmax(logits.astype(jnp.float32), axis=-1)
        return jnp.sum(p * z, axis=-1).astype(out_dtype)

    x2d = logits.reshape(rows, atoms)
    tile = _pick_tile_r(rows, x2d.dtype.itemsize, tile_r)
    cost = pl.CostEstimate(
        flops=5 * rows * atoms,
        transcendentals=rows * atoms,
        bytes_accessed=rows * atoms * x2d.dtype.itemsize + rows * jnp.dtype(out_dtype).itemsize,
    )
    kernel = _make_fused_softmax_expectation_kernel(float(v_min), float(delta_z))
    q = _run_rowwise_auto(kernel, x2d, out_dtype, tile, cost)
    return q.reshape(logits.shape[:-1])


# --------------------------------------------------------------------------- adapter


class QValueAdapterMultiDimPallas:
    """Pallas port of QValueAdapterMultiDim.

    __call__ returns the stacked q-values [..., num_actions]; the PyTorch forward
    returns list(q) over the leading batch dim (identical per-element values).
    """

    def __init__(self, categorical_config, *, tile_r=None,
                 min_rows_for_pallas=_DEFAULT_MIN_ROWS_FOR_PALLAS):
        self.v_min = float(categorical_config["v_min"])
        self.v_max = float(categorical_config["v_max"])
        self.num_atoms = int(categorical_config["num_atoms"])
        # Same fixed buffer as torch.linspace in __init__ (float32).
        self.z_support = jnp.linspace(self.v_min, self.v_max, self.num_atoms, dtype=jnp.float32)
        self.delta_z = (self.v_max - self.v_min) / (self.num_atoms - 1)
        self.tile_r = tile_r
        self.min_rows_for_pallas = min_rows_for_pallas

    def __call__(self, probabilities):
        return q_values_multi_dim(
            probabilities, self.v_min, self.v_max, self.num_atoms,
            tile_r=self.tile_r, min_rows_for_pallas=self.min_rows_for_pallas)

    forward = __call__

    def q_values_from_logits(self, logits):
        # Preferred when the producer is a softmax: one HBM pass over the logits.
        return q_values_from_logits_fused(
            logits, self.v_min, self.v_max, self.num_atoms,
            tile_r=self.tile_r, min_rows_for_pallas=self.min_rows_for_pallas)


# --------------------------------------------------------------------------- test


if __name__ == "__main__":
    config = {"v_min": -10.0, "v_max": 10.0, "num_atoms": 51}
    num_atoms = config["num_atoms"]

    key = jax.random.PRNGKey(0)
    k1, k2, k3, k4, k5 = jax.random.split(key, 5)

    # Adapter that always takes the Pallas path so the small test shapes exercise it.
    adapter = QValueAdapterMultiDimPallas(config, min_rows_for_pallas=0)
    z_ref = adapter.z_support

    def ref_q(p):
        return jnp.sum(p.astype(jnp.float32) * z_ref, axis=-1)

    # Case 1: [batch, num_actions, num_atoms]
    batch, num_actions = 2, 8
    probs3 = jax.nn.softmax(
        jax.random.normal(k1, (batch, num_actions, num_atoms), jnp.float32), axis=-1)
    q3 = jax.block_until_ready(adapter(probs3))
    assert q3.shape == (batch, num_actions)
    np.testing.assert_allclose(np.asarray(q3), np.asarray(ref_q(probs3)), rtol=1e-4, atol=1e-5)

    # Case 2: [batch, 2, num_actions, num_atoms]
    probs4 = jax.nn.softmax(
        jax.random.normal(k2, (batch, 2, num_actions, num_atoms), jnp.float32), axis=-1)
    q4 = jax.block_until_ready(adapter(probs4))
    assert q4.shape == (batch, 2, num_actions)
    np.testing.assert_allclose(np.asarray(q4), np.asarray(ref_q(probs4)), rtol=1e-4, atol=1e-5)

    # Case 3: multi-tile grid with a partial last block (2600 rows, tile_r=1024), bf16 input.
    adapter_tiled = QValueAdapterMultiDimPallas(config, tile_r=1024, min_rows_for_pallas=0)
    probs_t = jax.nn.softmax(
        jax.random.normal(k3, (325, 8, num_atoms), jnp.float32), axis=-1).astype(jnp.bfloat16)
    q_t = jax.block_until_ready(adapter_tiled(probs_t))
    assert q_t.shape == (325, 8)
    np.testing.assert_allclose(np.asarray(q_t), np.asarray(ref_q(probs_t)), rtol=1e-3, atol=1e-3)

    # Case 4: default adapter config (min_rows gate + generation-aware tile sizing),
    # 4096 flattened rows -> Pallas path with a single 4096-row tile.
    adapter_default = QValueAdapterMultiDimPallas(config)
    probs_big = jax.nn.softmax(
        jax.random.normal(k4, (256, 16, num_atoms), jnp.float32), axis=-1)
    q_big = jax.block_until_ready(adapter_default(probs_big))
    assert q_big.shape == (256, 16)
    np.testing.assert_allclose(np.asarray(q_big), np.asarray(ref_q(probs_big)), rtol=1e-4, atol=1e-5)

    # Case 5: fused softmax + expectation path (single HBM pass over the logits).
    logits_f = jax.random.normal(k5, (batch, num_actions, num_atoms), jnp.float32)
    q_f = jax.block_until_ready(adapter.q_values_from_logits(logits_f))
    ref_f = jnp.sum(jax.nn.softmax(logits_f, axis=-1) * z_ref, axis=-1)
    assert q_f.shape == (batch, num_actions)
    np.testing.assert_allclose(np.asarray(q_f), np.asarray(ref_f), rtol=1e-4, atol=1e-5)

    print("KERNEL_OK")
</pallas_src>

<mosaic_0001>
module attributes {stable_mosaic.version = 11 : i64} {
  func.func @kernel(%arg0: i32, %arg1: memref<1024x51xf32, #tpu.memory_space<vmem>>, %arg2: memref<8x128xf32, #tpu.memory_space<vmem>>) attributes {dimension_semantics = [#tpu.dimension_semantics<parallel>], iteration_bounds = array<i64: 1>, scalar_prefetch = 0 : i64, scratch_operands = 0 : i64, tpu.core_type = #tpu.core_type<tc>, window_params = [{transform_indices = @transform_0, window_bounds = array<i64: 1024, 51>}, {transform_indices = @transform_1, window_bounds = array<i64: 8, 128>}]} {
    %0 = tpu.iota {dimensions = array<i32: 1>} : vector<1x51xi32>
    %1 = arith.sitofp %0 : vector<1x51xi32> to vector<1x51xf32>
    %cst = arith.constant 4.000000e-01 : f32
    %2 = vector.broadcast %cst : f32 to vector<1x51xf32>
    %3 = arith.mulf %2, %1 : vector<1x51xf32>
    %cst_0 = arith.constant -1.000000e+01 : f32
    %4 = vector.broadcast %cst_0 : f32 to vector<1x51xf32>
    %5 = arith.addf %4, %3 : vector<1x51xf32>
    %c0 = arith.constant 0 : index
    %c0_1 = arith.constant 0 : index
    %6 = vector.load %arg1[%c0, %c0_1] : memref<1024x51xf32, #tpu.memory_space<vmem>>, vector<1024x51xf32>
    %7 = vector.shape_cast %6 : vector<1024x51xf32> to vector<8x128x51xf32>
    %8 = vector.shape_cast %5 : vector<1x51xf32> to vector<1x1x51xf32>
    %9 = vector.broadcast %8 : vector<1x1x51xf32> to vector<8x128x51xf32>
    %10 = arith.mulf %7, %9 : vector<8x128x51xf32>
    %cst_2 = arith.constant dense<0.000000e+00> : vector<8x128xf32>
    %11 = vector.multi_reduction <add>, %10, %cst_2 [2] : vector<8x128x51xf32> to vector<8x128xf32>
    %c0_3 = arith.constant 0 : index
    %c0_4 = arith.constant 0 : index
    %12 = vector.load %arg2[%c0_3, %c0_4] : memref<8x128xf32, #tpu.memory_space<vmem>>, vector<8x128xf32>
    tpu.vector_store %arg2[%c0_3, %c0_4], %11 {strides = array<i32>} : memref<8x128xf32, #tpu.memory_space<vmem>>, vector<8x128xf32>,
    return
  }
  func.func @transform_0(%arg0: i32) -> (i32, i32) {
    %c0_i32 = arith.constant 0 : i32
    %c0_i32_0 = arith.constant 0 : i32
    return %arg0, %c0_i32 : i32, i32
  }
  func.func @transform_1(%arg0: i32) -> (i32, i32) {
    %c0_i32 = arith.constant 0 : i32
    %c0_i32_0 = arith.constant 0 : i32
    return %arg0, %c0_i32 : i32, i32
  }
}

module attributes {stable_mosaic.version = 11 : i64} {
  func.func @kernel(%arg0: i32, %arg1: memref<1024x51xf32, #tpu.memory_space<vmem>>, %arg2: memref<1024x1xf32, #tpu.memory_space<vmem>>) attributes {dimension_semantics = [#tpu.dimension_semantics<parallel>], iteration_bounds = array<i64: 1>, scalar_prefetch = 0 : i64, scratch_operands = 0 : i64, tpu.core_type = #tpu.core_type<tc>, window_params = [{transform_indices = @transform_0, window_bounds = array<i64: 1024, 51>}, {transform_indices = @transform_1, window_bounds = array<i64: 1024, 1>}]} {
    %0 = tpu.iota {dimensions = array<i32: 1>} : vector<1x51xi32>
    %1 = arith.sitofp %0 : vector<1x51xi32> to vector<1x51xf32>
    %cst = arith.constant 4.000000e-01 : f32
    %2 = vector.broadcast %cst : f32 to vector<1x51xf32>
    %3 = arith.mulf %2, %1 : vector<1x51xf32>
    %cst_0 = arith.constant -1.000000e+01 : f32
    %4 = vector.broadcast %cst_0 : f32 to vector<1x51xf32>
    %5 = arith.addf %4, %3 : vector<1x51xf32>
    %c0 = arith.constant 0 : index
    %c0_1 = arith.constant 0 : index
    %6 = vector.load %arg1[%c0, %c0_1] : memref<1024x51xf32, #tpu.memory_space<vmem>>, vector<1024x51xf32>
    %7 = vector.broadcast %5 : vector<1x51xf32> to vector<1024x51xf32>
    %8 = arith.mulf %6, %7 : vector<1024x51xf32>
    %cst_2 = arith.constant dense<0.000000e+00> : vector<1024xf32>
    %9 = vector.multi_reduction <add>, %8, %cst_2 [1] : vector<1024x51xf32> to vector<1024xf32>
    %10 = vector.shape_cast %9 : vector<1024xf32> to vector<1024x1xf32>
    %c0_3 = arith.constant 0 : index
    %c0_4 = arith.constant 0 : index
    %11 = vector.load %arg2[%c0_3, %c0_4] : memref<1024x1xf32, #tpu.memory_space<vmem>>, vector<1024x1xf32>
    tpu.vector_store %arg2[%c0_3, %c0_4], %10 {strides = array<i32>} : memref<1024x1xf32, #tpu.memory_space<vmem>>, vector<1024x1xf32>,
    return
  }
  func.func @transform_0(%arg0: i32) -> (i32, i32) {
    %c0_i32 = arith.constant 0 : i32
    %c0_i32_0 = arith.constant 0 : i32
    return %arg0, %c0_i32 : i32, i32
  }
  func.func @transform_1(%arg0: i32) -> (i32, i32) {
    %c0_i32 = arith.constant 0 : i32
    %c0_i32_0 = arith.constant 0 : i32
    return %arg0, %c0_i32 : i32, i32
  }
}

</mosaic_0001>

<llo_original>
// kernel: tpu_custom_call.1
$region0: #{tpu_custom_call.1}
  #allocation0 [shape = 'u32[]', space=smem, size = 0x4, offset = 0x4, fixed_abs, tag = 'smem constant byte address 0x4 - core index']
  #allocation1 [shape = 'u32[144,128]{1,0:T(1,128)}', space=vmem, size = 0x12000, scoped, tag = 'internal scratch']
  %s0 = inlined_call_operand.vmem [shape: f32[1024,51], index: 0, kind: input, shape index: {}]
  %s1 = inlined_call_operand.hbm [shape: f32[8,128], index: 1, kind: output, shape index: {}]
  %s2 = sld [smem:[#allocation0]]
  $region14: #{tpu_custom_call.1} parent=0
    _
  %s4 = ssub.s32 1, %s2
  %s5 = scalar_select 0, %s4, %s2
  $region1: #{tpu_custom_call.1} parent=0
    #allocation2 [shape = 'u8[4096]{0}', space=vmem, size = 0x1000, scoped, tag = 'output window, operand 0, single buffered']
    #allocation3 [shape = 's32[1]{0}', space=sflag, size = 0x4, scoped, tag = 'scoped memory for tpu_custom_call.1']
    %6 = vsyncpa [#allocation3], 0
    // Predicated region
    $region2: #{tpu_custom_call.1} parent=1 // pred_check
      _
    $region3: #{tpu_custom_call.1} parent=1 // pred_check_branch
      %8 = sbr.rel (0) target = $region5
    $region4: #{tpu_custom_call.1} parent=1 // pred_region
      _
    $region5: #{tpu_custom_call.1} parent=1 // pred_fallthru
      _
    %v9 = vlaneseq
    %v10 = vand.u32 %v9, 127
    %v11 = vcvt.s32.f32 %v10
    %v12 = vmul.f32 %v11, 0.4
    %v13 = vadd.f32 %v12, -10.0
    %v14 = vld [vmem:[%s0] sm:$0xff]
    %v15 = vld [vmem:[%s0 + $0x8] sm:$0xff]
    %v16 = vld [vmem:[%s0 + $0x10] sm:$0xff]
    %v17 = vld [vmem:[%s0 + $0x18] sm:$0xff]
    %v18 = vld [vmem:[%s0 + $0x20] sm:$0xff]
    %v19 = vld [vmem:[%s0 + $0x28] sm:$0xff]
    %v20 = vld [vmem:[%s0 + $0x30] sm:$0xff]
    %v21 = vld [vmem:[%s0 + $0x38] sm:$0xff]
    %v22 = vld [vmem:[%s0 + $0x40] sm:$0xff]
    %v23 = vld [vmem:[%s0 + $0x48] sm:$0xff]
    %v24 = vld [vmem:[%s0 + $0x50] sm:$0xff]
    %v25 = vld [vmem:[%s0 + $0x58] sm:$0xff]
    %v26 = vld [vmem:[%s0 + $0x60] sm:$0xff]
    %v27 = vld [vmem:[%s0 + $0x68] sm:$0xff]
    %v28 = vld [vmem:[%s0 + $0x70] sm:$0xff]
    %v29 = vld [vmem:[%s0 + $0x78] sm:$0xff]
    %v30 = vld [vmem:[%s0 + $0x80] sm:$0xff]
    %v31 = vld [vmem:[%s0 + $0x88] sm:$0xff]
    %v32 = vld [vmem:[%s0 + $0x90] sm:$0xff]
    %v33 = vld [vmem:[%s0 + $0x98] sm:$0xff]
    %v34 = vld [vmem:[%s0 + $0xa0] sm:$0xff]
    %v35 = vld [vmem:[%s0 + $0xa8] sm:$0xff]
    %v36 = vld [vmem:[%s0 + $0xb0] sm:$0xff]
    %v37 = vld [vmem:[%s0 + $0xb8] sm:$0xff]
    %v38 = vld [vmem:[%s0 + $0xc0] sm:$0xff]
    %v39 = vld [vmem:[%s0 + $0xc8] sm:$0xff]
    %v40 = vld [vmem:[%s0 + $0xd0] sm:$0xff]
    %v41 = vld [vmem:[%s0 + $0xd8] sm:$0xff]
    %v42 = vld [vmem:[%s0 + $0xe0] sm:$0xff]
    %v43 = vld [vmem:[%s0 + $0xe8] sm:$0xff]
    %v44 = vld [vmem:[%s0 + $0xf0] sm:$0xff]
    %v45 = vld [vmem:[%s0 + $0xf8] sm:$0xff]
    %v46 = vld [vmem:[%s0 + $0x100] sm:$0xff]
    %v47 = vld [vmem:[%s0 + $0x108] sm:$0xff]
    %v48 = vld [vmem:[%s0 + $0x110] sm:$0xff]
    %v49 = vld [vmem:[%s0 + $0x118] sm:$0xff]
    %v50 = vld [vmem:[%s0 + $0x120] sm:$0xff]
    %v51 = vld [vmem:[%s0 + $0x128] sm:$0xff]
    %v52 = vld [vmem:[%s0 + $0x130] sm:$0xff]
    %v53 = vld [vmem:[%s0 + $0x138] sm:$0xff]
    %v54 = vld [vmem:[%s0 + $0x140] sm:$0xff]
    %v55 = vld [vmem:[%s0 + $0x148] sm:$0xff]
    %v56 = vld [vmem:[%s0 + $0x150] sm:$0xff]
    %v57 = vld [vmem:[%s0 + $0x158] sm:$0xff]
    %v58 = vld [vmem:[%s0 + $0x160] sm:$0xff]
    %v59 = vld [vmem:[%s0 + $0x168] sm:$0xff]
    %v60 = vld [vmem:[%s0 + $0x170] sm:$0xff]
    %v61 = vld [vmem:[%s0 + $0x178] sm:$0xff]
    %v62 = vld [vmem:[%s0 + $0x180] sm:$0xff]
    %v63 = vld [vmem:[%s0 + $0x188] sm:$0xff]
    %v64 = vld [vmem:[%s0 + $0x190] sm:$0xff]
    %v65 = vld [vmem:[%s0 + $0x198] sm:$0xff]
    %v66 = vld [vmem:[%s0 + $0x1a0] sm:$0xff]
    %v67 = vld [vmem:[%s0 + $0x1a8] sm:$0xff]
    %v68 = vld [vmem:[%s0 + $0x1b0] sm:$0xff]
    %v69 = vld [vmem:[%s0 + $0x1b8] sm:$0xff]
    %v70 = vld [vmem:[%s0 + $0x1c0] sm:$0xff]
    %v71 = vld [vmem:[%s0 + $0x1c8] sm:$0xff]
    %v72 = vld [vmem:[%s0 + $0x1d0] sm:$0xff]
    %v73 = vld [vmem:[%s0 + $0x1d8] sm:$0xff]
    %v74 = vld [vmem:[%s0 + $0x1e0] sm:$0xff]
    %v75 = vld [vmem:[%s0 + $0x1e8] sm:$0xff]
    %v76 = vld [vmem:[%s0 + $0x1f0] sm:$0xff]
    %v77 = vld [vmem:[%s0 + $0x1f8] sm:$0xff]
    %v78 = vld [vmem:[%s0 + $0x200] sm:$0xff]
    %v79 = vld [vmem:[%s0 + $0x208] sm:$0xff]
    %v80 = vld [vmem:[%s0 + $0x210] sm:$0xff]
    %v81 = vld [vmem:[%s0 + $0x218] sm:$0xff]
    %v82 = vld [vmem:[%s0 + $0x220] sm:$0xff]
    %v83 = vld [vmem:[%s0 + $0x228] sm:$0xff]
    %v84 = vld [vmem:[%s0 + $0x230] sm:$0xff]
    %v85 = vld [vmem:[%s0 + $0x238] sm:$0xff]
    %v86 = vld [vmem:[%s0 + $0x240] sm:$0xff]
    %v87 = vld [vmem:[%s0 + $0x248] sm:$0xff]
    %v88 = vld [vmem:[%s0 + $0x250] sm:$0xff]
    %v89 = vld [vmem:[%s0 + $0x258] sm:$0xff]
    %v90 = vld [vmem:[%s0 + $0x260] sm:$0xff]
    %v91 = vld [vmem:[%s0 + $0x268] sm:$0xff]
    %v92 = vld [vmem:[%s0 + $0x270] sm:$0xff]
    %v93 = vld [vmem:[%s0 + $0x278] sm:$0xff]
    %v94 = vld [vmem:[%s0 + $0x280] sm:$0xff]
    %v95 = vld [vmem:[%s0 + $0x288] sm:$0xff]
    %v96 = vld [vmem:[%s0 + $0x290] sm:$0xff]
    %v97 = vld [vmem:[%s0 + $0x298] sm:$0xff]
    %v98 = vld [vmem:[%s0 + $0x2a0] sm:$0xff]
    %v99 = vld [vmem:[%s0 + $0x2a8] sm:$0xff]
    %v100 = vld [vmem:[%s0 + $0x2b0] sm:$0xff]
    %v101 = vld [vmem:[%s0 + $0x2b8] sm:$0xff]
    %v102 = vld [vmem:[%s0 + $0x2c0] sm:$0xff]
    %v103 = vld [vmem:[%s0 + $0x2c8] sm:$0xff]
    %v104 = vld [vmem:[%s0 + $0x2d0] sm:$0xff]
    %v105 = vld [vmem:[%s0 + $0x2d8] sm:$0xff]
    %v106 = vld [vmem:[%s0 + $0x2e0] sm:$0xff]
    %v107 = vld [vmem:[%s0 + $0x2e8] sm:$0xff]
    %v108 = vld [vmem:[%s0 + $0x2f0] sm:$0xff]
    %v109 = vld [vmem:[%s0 + $0x2f8] sm:$0xff]
    %v110 = vld [vmem:[%s0 + $0x300] sm:$0xff]
    %v111 = vld [vmem:[%s0 + $0x308] sm:$0xff]
    %v112 = vld [vmem:[%s0 + $0x310] sm:$0xff]
    %v113 = vld [vmem:[%s0 + $0x318] sm:$0xff]
    %v114 = vld [vmem:[%s0 + $0x320] sm:$0xff]
    %v115 = vld [vmem:[%s0 + $0x328] sm:$0xff]
    %v116 = vld [vmem:[%s0 + $0x330] sm:$0xff]
    %v117 = vld [vmem:[%s0 + $0x338] sm:$0xff]
    %v118 = vld [vmem:[%s0 + $0x340] sm:$0xff]
    %v119 = vld [vmem:[%s0 + $0x348] sm:$0xff]
    %v120 = vld [vmem:[%s0 + $0x350] sm:$0xff]
    %v121 = vld [vmem:[%s0 + $0x358] sm:$0xff]
    %v122 = vld [vmem:[%s0 + $0x360] sm:$0xff]
    %v123 = vld [vmem:[%s0 + $0x368] sm:$0xff]
    %v124 = vld [vmem:[%s0 + $0x370] sm:$0xff]
    %v125 = vld [vmem:[%s0 + $0x378] sm:$0xff]
    %v126 = vld [vmem:[%s0 + $0x380] sm:$0xff]
    %v127 = vld [vmem:[%s0 + $0x388] sm:$0xff]
    %v128 = vld [vmem:[%s0 + $0x390] sm:$0xff]
    %v129 = vld [vmem:[%s0 + $0x398] sm:$0xff]
    %v130 = vld [vmem:[%s0 + $0x3a0] sm:$0xff]
    %v131 = vld [vmem:[%s0 + $0x3a8] sm:$0xff]
    %v132 = vld [vmem:[%s0 + $0x3b0] sm:$0xff]
    %v133 = vld [vmem:[%s0 + $0x3b8] sm:$0xff]
    %v134 = vld [vmem:[%s0 + $0x3c0] sm:$0xff]
    %v135 = vld [vmem:[%s0 + $0x3c8] sm:$0xff]
    %v136 = vld [vmem:[%s0 + $0x3d0] sm:$0xff]
    %v137 = vld [vmem:[%s0 + $0x3d8] sm:$0xff]
    %v138 = vld [vmem:[%s0 + $0x3e0] sm:$0xff]
    %v139 = vld [vmem:[%s0 + $0x3e8] sm:$0xff]
    %v140 = vld [vmem:[%s0 + $0x3f0] sm:$0xff]
    %v141 = vld [vmem:[%s0 + $0x3f8] sm:$0xff]
    %v142 = vmul.f32 %v14, %v13
    %v143 = vmul.f32 %v15, %v13
    %v144 = vmul.f32 %v16, %v13
    %v145 = vmul.f32 %v17, %v13
    %v146 = vmul.f32 %v18, %v13
    %v147 = vmul.f32 %v19, %v13
    %v148 = vmul.f32 %v20, %v13
    %v149 = vmul.f32 %v21, %v13
    %v150 = vmul.f32 %v22, %v13
    %v151 = vmul.f32 %v23, %v13
    %v152 = vmul.f32 %v24, %v13
    %v153 = vmul.f32 %v25, %v13
    %v154 = vmul.f32 %v26, %v13
    %v155 = vmul.f32 %v27, %v13
    %v156 = vmul.f32 %v28, %v13
    %v157 = vmul.f32 %v29, %v13
    %v158 = vmul.f32 %v30, %v13
    %v159 = vmul.f32 %v31, %v13
    %v160 = vmul.f32 %v32, %v13
    %v161 = vmul.f32 %v33, %v13
    %v162 = vmul.f32 %v34, %v13
    %v163 = vmul.f32 %v35, %v13
    %v164 = vmul.f32 %v36, %v13
    %v165 = vmul.f32 %v37, %v13
    %v166 = vmul.f32 %v38, %v13
    %v167 = vmul.f32 %v39, %v13
    %v168 = vmul.f32 %v40, %v13
    %v169 = vmul.f32 %v41, %v13
    %v170 = vmul.f32 %v42, %v13
    %v171 = vmul.f32 %v43, %v13
    %v172 = vmul.f32 %v44, %v13
    %v173 = vmul.f32 %v45, %v13
    %v174 = vmul.f32 %v46, %v13
    %v175 = vmul.f32 %v47, %v13
    %v176 = vmul.f32 %v48, %v13
    %v177 = vmul.f32 %v49, %v13
    %v178 = vmul.f32 %v50, %v13
    %v179 = vmul.f32 %v51, %v13
    %v180 = vmul.f32 %v52, %v13
    %v181 = vmul.f32 %v53, %v13
    %v182 = vmul.f32 %v54, %v13
    %v183 = vmul.f32 %v55, %v13
    %v184 = vmul.f32 %v56, %v13
    %v185 = vmul.f32 %v57, %v13
    %v186 = vmul.f32 %v58, %v13
    %v187 = vmul.f32 %v59, %v13
    %v188 = vmul.f32 %v60, %v13
    %v189 = vmul.f32 %v61, %v13
    %v190 = vmul.f32 %v62, %v13
    %v191 = vmul.f32 %v63, %v13
    %v192 = vmul.f32 %v64, %v13
    %v193 = vmul.f32 %v65, %v13
    %v194 = vmul.f32 %v66, %v13
    %v195 = vmul.f32 %v67, %v13
    %v196 = vmul.f32 %v68, %v13
    %v197 = vmul.f32 %v69, %v13
    %v198 = vmul.f32 %v70, %v13
    %v199 = vmul.f32 %v71, %v13
    %v200 = vmul.f32 %v72, %v13
    %v201 = vmul.f32 %v73, %v13
    %v202 = vmul.f32 %v74, %v13
    %v203 = vmul.f32 %v75, %v13
    %v204 = vmul.f32 %v76, %v13
    %v205 = vmul.f32 %v77, %v13
    %v206 = vmul.f32 %v78, %v13
    %v207 = vmul.f32 %v79, %v13
    %v208 = vmul.f32 %v80, %v13
    %v209 = vmul.f32 %v81, %v13
    %v210 = vmul.f32 %v82, %v13
    %v211 = vmul.f32 %v83, %v13
    %v212 = vmul.f32 %v84, %v13
    %v213 = vmul.f32 %v85, %v13
    %v214 = vmul.f32 %v86, %v13
    %v215 = vmul.f32 %v87, %v13
    %v216 = vmul.f32 %v88, %v13
    %v217 = vmul.f32 %v89, %v13
    %v218 = vmul.f32 %v90, %v13
    %v219 = vmul.f32 %v91, %v13
    %v220 = vmul.f32 %v92, %v13
    %v221 = vmul.f32 %v93, %v13
    %v222 = vmul.f32 %v94, %v13
    %v223 = vmul.f32 %v95, %v13
    %v224 = vmul.f32 %v96, %v13
    %v225 = vmul.f32 %v97, %v13
    %v226 = vmul.f32 %v98, %v13
    %v227 = vmul.f32 %v99, %v13
    %v228 = vmul.f32 %v100, %v13
    %v229 = vmul.f32 %v101, %v13
    %v230 = vmul.f32 %v102, %v13
    %v231 = vmul.f32 %v103, %v13
    %v232 = vmul.f32 %v104, %v13
    %v233 = vmul.f32 %v105, %v13
    %v234 = vmul.f32 %v106, %v13
    %v235 = vmul.f32 %v107, %v13
    %v236 = vmul.f32 %v108, %v13
    %v237 = vmul.f32 %v109, %v13
    %v238 = vmul.f32 %v110, %v13
    %v239 = vmul.f32 %v111, %v13
    %v240 = vmul.f32 %v112, %v13
    %v241 = vmul.f32 %v113, %v13
    %v242 = vmul.f32 %v114, %v13
    %v243 = vmul.f32 %v115, %v13
    %v244 = vmul.f32 %v116, %v13
    %v245 = vmul.f32 %v117, %v13
    %v246 = vmul.f32 %v118, %v13
    %v247 = vmul.f32 %v119, %v13
    %v248 = vmul.f32 %v120, %v13
    %v249 = vmul.f32 %v121, %v13
    %v250 = vmul.f32 %v122, %v13
    %v251 = vmul.f32 %v123, %v13
    %v252 = vmul.f32 %v124, %v13
    %v253 = vmul.f32 %v125, %v13
    %v254 = vmul.f32 %v126, %v13
    %v255 = vmul.f32 %v127, %v13
    %v256 = vmul.f32 %v128, %v13
    %v257 = vmul.f32 %v129, %v13
    %v258 = vmul.f32 %v130, %v13
    %v259 = vmul.f32 %v131, %v13
    %v260 = vmul.f32 %v132, %v13
    %v261 = vmul.f32 %v133, %v13
    %v262 = vmul.f32 %v134, %v13
    %v263 = vmul.f32 %v135, %v13
    %v264 = vmul.f32 %v136, %v13
    %v265 = vmul.f32 %v137, %v13
    %v266 = vmul.f32 %v138, %v13
    %v267 = vmul.f32 %v139, %v13
    %v268 = vmul.f32 %v140, %v13
    %v269 = vmul.f32 %v141, %v13
    %vm270 = vcmask 416768
    %v271 = vsel %vm270, %v142, 0.0
    %272 = vadd.xlane.f32.xlu0 %v271
    %v273 = vpop.xlane.xlu0 %272
    %v274 = vsel %vm270, %v143, 0.0
    %275 = vadd.xlane.f32.xlu0 %v274
    %v276 = vpop.xlane.xlu0 %275
    %v277 = vsel %vm270, %v144, 0.0
    %278 = vadd.xlane.f32.xlu0 %v277
    %v279 = vpop.xlane.xlu0 %278
    %v280 = vsel %vm270, %v145, 0.0
    %281 = vadd.xlane.f32.xlu0 %v280
    %v282 = vpop.xlane.xlu0 %281
    %v283 = vsel %vm270, %v146, 0.0
    %284 = vadd.xlane.f32.xlu0 %v283
    %v285 = vpop.xlane.xlu0 %284
    %v286 = vsel %vm270, %v147, 0.0
    %287 = vadd.xlane.f32.xlu0 %v286
    %v288 = vpop.xlane.xlu0 %287
    %v289 = vsel %vm270, %v148, 0.0
    %290 = vadd.xlane.f32.xlu0 %v289
    %v291 = vpop.xlane.xlu0 %290
    %v292 = vsel %vm270, %v149, 0.0
    %293 = vadd.xlane.f32.xlu0 %v292
    %v294 = vpop.xlane.xlu0 %293
    %v295 = vsel %vm270, %v150, 0.0
    %296 = vadd.xlane.f32.xlu0 %v295
    %v297 = vpop.xlane.xlu0 %296
    %v298 = vsel %vm270, %v151, 0.0
    %299 = vadd.xlane.f32.xlu0 %v298
    %v300 = vpop.xlane.xlu0 %299
    %v301 = vsel %vm270, %v152, 0.0
    %302 = vadd.xlane.f32.xlu0 %v301
    %v303 = vpop.xlane.xlu0 %302
    %v304 = vsel %vm270, %v153, 0.0
    %305 = vadd.xlane.f32.xlu0 %v304
    %v306 = vpop.xlane.xlu0 %305
    %v307 = vsel %vm270, %v154, 0.0
    %308 = vadd.xlane.f32.xlu0 %v307
    %v309 = vpop.xlane.xlu0 %308
    %v310 = vsel %vm270, %v155, 0.0
    %311 = vadd.xlane.f32.xlu0 %v310
    %v312 = vpop.xlane.xlu0 %311
    %v313 = vsel %vm270, %v156, 0.0
    %314 = vadd.xlane.f32.xlu0 %v313
    %v315 = vpop.xlane.xlu0 %314
    %v316 = vsel %vm270, %v157, 0.0
    %317 = vadd.xlane.f32.xlu0 %v316
    %v318 = vpop.xlane.xlu0 %317
    %v319 = vsel %vm270, %v158, 0.0
    %320 = vadd.xlane.f32.xlu0 %v319
    %v321 = vpop.xlane.xlu0 %320
    %v322 = vsel %vm270, %v159, 0.0
    %323 = vadd.xlane.f32.xlu0 %v322
    %v324 = vpop.xlane.xlu0 %323
    %v325 = vsel %vm270, %v160, 0.0
    %326 = vadd.xlane.f32.xlu0 %v325
    %v327 = vpop.xlane.xlu0 %326
    %v328 = vsel %vm270, %v161, 0.0
    %329 = vadd.xlane.f32.xlu0 %v328
    %v330 = vpop.xlane.xlu0 %329
    %v331 = vsel %vm270, %v162, 0.0
    %332 = vadd.xlane.f32.xlu0 %v331
    %v333 = vpop.xlane.xlu0 %332
    %v334 = vsel %vm270, %v163, 0.0
    %335 = vadd.xlane.f32.xlu0 %v334
    %v336 = vpop.xlane.xlu0 %335
    %v337 = vsel %vm270, %v164, 0.0
    %338 = vadd.xlane.f32.xlu0 %v337
    %v339 = vpop.xlane.xlu0 %338
    %v340 = vsel %vm270, %v165, 0.0
    %341 = vadd.xlane.f32.xlu0 %v340
    %v342 = vpop.xlane.xlu0 %341
    %v343 = vsel %vm270, %v166, 0.0
    %344 = vadd.xlane.f32.xlu0 %v343
    %v345 = vpop.xlane.xlu0 %344
    %v346 = vsel %vm270, %v167, 0.0
    %347 = vadd.xlane.f32.xlu0 %v346
    %v348 = vpop.xlane.xlu0 %347
    %v349 = vsel %vm270, %v168, 0.0
    %350 = vadd.xlane.f32.xlu0 %v349
    %v351 = vpop.xlane.xlu0 %350
    %v352 = vsel %vm270, %v169, 0.0
    %353 = vadd.xlane.f32.xlu0 %v352
    %v354 = vpop.xlane.xlu0 %353
    %v355 = vsel %vm270, %v170, 0.0
    %356 = vadd.xlane.f32.xlu0 %v355
    %v357 = vpop.xlane.xlu0 %356
    %v358 = vsel %vm270, %v171, 0.0
    %359 = vadd.xlane.f32.xlu0 %v358
    %v360 = vpop.xlane.xlu0 %359
    %v361 = vsel %vm270, %v172, 0.0
    %362 = vadd.xlane.f32.xlu0 %v361
    %v363 = vpop.xlane.xlu0 %362
    %v364 = vsel %vm270, %v173, 0.0
    %365 = vadd.xlane.f32.xlu0 %v364
    %v366 = vpop.xlane.xlu0 %365
    %v367 = vsel %vm270, %v174, 0.0
    %368 = vadd.xlane.f32.xlu0 %v367
    %v369 = vpop.xlane.xlu0 %368
    %v370 = vsel %vm270, %v175, 0.0
    %371 = vadd.xlane.f32.xlu0 %v370
    %v372 = vpop.xlane.xlu0 %371
    %v373 = vsel %vm270, %v176, 0.0
    %374 = vadd.xlane.f32.xlu0 %v373
    %v375 = vpop.xlane.xlu0 %374
    %v376 = vsel %vm270, %v177, 0.0
    %377 = vadd.xlane.f32.xlu0 %v376
    %v378 = vpop.xlane.xlu0 %377
    %v379 = vsel %vm270, %v178, 0.0
    %380 = vadd.xlane.f32.xlu0 %v379
    %v381 = vpop.xlane.xlu0 %380
    %v382 = vsel %vm270, %v179, 0.0
    %383 = vadd.xlane.f32.xlu0 %v382
    %v384 = vpop.xlane.xlu0 %383
    %v385 = vsel %vm270, %v180, 0.0
    %386 = vadd.xlane.f32.xlu0 %v385
    %v387 = vpop.xlane.xlu0 %386
    %v388 = vsel %vm270, %v181, 0.0
    %389 = vadd.xlane.f32.xlu0 %v388
    %v390 = vpop.xlane.xlu0 %389
    %v391 = vsel %vm270, %v182, 0.0
    %392 = vadd.xlane.f32.xlu0 %v391
    %v393 = vpop.xlane.xlu0 %392
    %v394 = vsel %vm270, %v183, 0.0
    %395 = vadd.xlane.f32.xlu0 %v394
    %v396 = vpop.xlane.xlu0 %395
    %v397 = vsel %vm270, %v184, 0.0
    %398 = vadd.xlane.f32.xlu0 %v397
    %v399 = vpop.xlane.xlu0 %398
    %v400 = vsel %vm270, %v185, 0.0
    %401 = vadd.xlane.f32.xlu0 %v400
    %v402 = vpop.xlane.xlu0 %401
    %v403 = vsel %vm270, %v186, 0.0
    %404 = vadd.xlane.f32.xlu0 %v403
    %v405 = vpop.xlane.xlu0 %404
    %v406 = vsel %vm270, %v187, 0.0
    %407 = vadd.xlane.f32.xlu0 %v406
    %v408 = vpop.xlane.xlu0 %407
    %v409 = vsel %vm270, %v188, 0.0
    %410 = vadd.xlane.f32.xlu0 %v409
    %v411 = vpop.xlane.xlu0 %410
    %v412 = vsel %vm270, %v189, 0.0
    %413 = vadd.xlane.f32.xlu0 %v412
    %v414 = vpop.xlane.xlu0 %413
    %v415 = vsel %vm270, %v190, 0.0
    %416 = vadd.xlane.f32.xlu0 %v415
    %v417 = vpop.xlane.xlu0 %416
    %v418 = vsel %vm270, %v191, 0.0
    %419 = vadd.xlane.f32.xlu0 %v418
    %v420 = vpop.xlane.xlu0 %419
    %v421 = vsel %vm270, %v192, 0.0
    %422 = vadd.xlane.f32.xlu0 %v421
    %v423 = vpop.xlane.xlu0 %422
    %v424 = vsel %vm270, %v193, 0.0
    %425 = vadd.xlane.f32.xlu0 %v424
    %v426 = vpop.xlane.xlu0 %425
    %v427 = vsel %vm270, %v194, 0.0
    %428 = vadd.xlane.f32.xlu0 %v427
    %v429 = vpop.xlane.xlu0 %428
    %v430 = vsel %vm270, %v195, 0.0
    %431 = vadd.xlane.f32.xlu0 %v430
    %v432 = vpop.xlane.xlu0 %431
    %v433 = vsel %vm270, %v196, 0.0
    %434 = vadd.xlane.f32.xlu0 %v433
    %v435 = vpop.xlane.xlu0 %434
    %v436 = vsel %vm270, %v197, 0.0
    %437 = vadd.xlane.f32.xlu0 %v436
    %v438 = vpop.xlane.xlu0 %437
    %v439 = vsel %vm270, %v198, 0.0
    %440 = vadd.xlane.f32.xlu0 %v439
    %v441 = vpop.xlane.xlu0 %440
    %v442 = vsel %vm270, %v199, 0.0
    %443 = vadd.xlane.f32.xlu0 %v442
    %v444 = vpop.xlane.xlu0 %443
    %v445 = vsel %vm270, %v200, 0.0
    %446 = vadd.xlane.f32.xlu0 %v445
    %v447 = vpop.xlane.xlu0 %446
    %v448 = vsel %vm270, %v201, 0.0
    %449 = vadd.xlane.f32.xlu0 %v448
    %v450 = vpop.xlane.xlu0 %449
    %v451 = vsel %vm270, %v202, 0.0
    %452 = vadd.xlane.f32.xlu0 %v451
    %v453 = vpop.xlane.xlu0 %452
    %v454 = vsel %vm270, %v203, 0.0
    %455 = vadd.xlane.f32.xlu0 %v454
    %v456 = vpop.xlane.xlu0 %455
    %v457 = vsel %vm270, %v204, 0.0
    %458 = vadd.xlane.f32.xlu0 %v457
    %v459 = vpop.xlane.xlu0 %458
    %v460 = vsel %vm270, %v205, 0.0
    %461 = vadd.xlane.f32.xlu0 %v460
    %v462 = vpop.xlane.xlu0 %461
    %v463 = vsel %vm270, %v206, 0.0
    %464 = vadd.xlane.f32.xlu0 %v463
    %v465 = vpop.xlane.xlu0 %464
    %v466 = vsel %vm270, %v207, 0.0
    %467 = vadd.xlane.f32.xlu0 %v466
    %v468 = vpop.xlane.xlu0 %467
    %v469 = vsel %vm270, %v208, 0.0
    %470 = vadd.xlane.f32.xlu0 %v469
    %v471 = vpop.xlane.xlu0 %470
    %v472 = vsel %vm270, %v209, 0.0
    %473 = vadd.xlane.f32.xlu0 %v472
    %v474 = vpop.xlane.xlu0 %473
    %v475 = vsel %vm270, %v210, 0.0
    %476 = vadd.xlane.f32.xlu0 %v475
    %v477 = vpop.xlane.xlu0 %476
    %v478 = vsel %vm270, %v211, 0.0
    %479 = vadd.xlane.f32.xlu0 %v478
    %v480 = vpop.xlane.xlu0 %479
    %v481 = vsel %vm270, %v212, 0.0
    %482 = vadd.xlane.f32.xlu0 %v481
    %v483 = vpop.xlane.xlu0 %482
    %v484 = vsel %vm270, %v213, 0.0
    %485 = vadd.xlane.f32.xlu0 %v484
    %v486 = vpop.xlane.xlu0 %485
    %v487 = vsel %vm270, %v214, 0.0
    %488 = vadd.xlane.f32.xlu0 %v487
    %v489 = vpop.xlane.xlu0 %488
    %v490 = vsel %vm270, %v215, 0.0
    %491 = vadd.xlane.f32.xlu0 %v490
    %v492 = vpop.xlane.xlu0 %491
    %v493 = vsel %vm270, %v216, 0.0
    %494 = vadd.xlane.f32.xlu0 %v493
    %v495 = vpop.xlane.xlu0 %494
    %v496 = vsel %vm270, %v217, 0.0
    %497 = vadd.xlane.f32.xlu0 %v496
    %v498 = vpop.xlane.xlu0 %497
    %v499 = vsel %vm270, %v218, 0.0
    %500 = vadd.xlane.f32.xlu0 %v499
    %v501 = vpop.xlane.xlu0 %500
    %v502 = vsel %vm270, %v219, 0.0
    %503 = vadd.xlane.f32.xlu0 %v502
    %v504 = vpop.xlane.xlu0 %503
    %v505 = vsel %vm270, %v220, 0.0
    %506 = vadd.xlane.f32.xlu0 %v505
    %v507 = vpop.xlane.xlu0 %506
    %v508 = vsel %vm270, %v221, 0.0
    %509 = vadd.xlane.f32.xlu0 %v508
    %v510 = vpop.xlane.xlu0 %509
    %v511 = vsel %vm270, %v222, 0.0
    %512 = vadd.xlane.f32.xlu0 %v511
    %v513 = vpop.xlane.xlu0 %512
    %v514 = vsel %vm270, %v223, 0.0
    %515 = vadd.xlane.f32.xlu0 %v514
    %v516 = vpop.xlane.xlu0 %515
    %v517 = vsel %vm270, %v224, 0.0
    %518 = vadd.xlane.f32.xlu0 %v517
    %v519 = vpop.xlane.xlu0 %518
    %v520 = vsel %vm270, %v225, 0.0
    %521 = vadd.xlane.f32.xlu0 %v520
    %v522 = vpop.xlane.xlu0 %521
    %v523 = vsel %vm270, %v226, 0.0
    %524 = vadd.xlane.f32.xlu0 %v523
    %v525 = vpop.xlane.xlu0 %524
    %v526 = vsel %vm270, %v227, 0.0
    %527 = vadd.xlane.f32.xlu0 %v526
    %v528 = vpop.xlane.xlu0 %527
    %v529 = vsel %vm270, %v228, 0.0
    %530 = vadd.xlane.f32.xlu0 %v529
    %v531 = vpop.xlane.xlu0 %530
    %v532 = vsel %vm270, %v229, 0.0
    %533 = vadd.xlane.f32.xlu0 %v532
    %v534 = vpop.xlane.xlu0 %533
    %v535 = vsel %vm270, %v230, 0.0
    %536 = vadd.xlane.f32.xlu0 %v535
    %v537 = vpop.xlane.xlu0 %536
    %v538 = vsel %vm270, %v231, 0.0
    %539 = vadd.xlane.f32.xlu0 %v538
    %v540 = vpop.xlane.xlu0 %539
    %v541 = vsel %vm270, %v232, 0.0
    %542 = vadd.xlane.f32.xlu0 %v541
    %v543 = vpop.xlane.xlu0 %542
    %v544 = vsel %vm270, %v233, 0.0
    %545 = vadd.xlane.f32.xlu0 %v544
    %v546 = vpop.xlane.xlu0 %545
    %v547 = vsel %vm270, %v234, 0.0
    %548 = vadd.xlane.f32.xlu0 %v547
    %v549 = vpop.xlane.xlu0 %548
    %v550 = vsel %vm270, %v235, 0.0
    %551 = vadd.xlane.f32.xlu0 %v550
    %v552 = vpop.xlane.xlu0 %551
    %v553 = vsel %vm270, %v236, 0.0
    %554 = vadd.xlane.f32.xlu0 %v553
    %v555 = vpop.xlane.xlu0 %554
    %v556 = vsel %vm270, %v237, 0.0
    %557 = vadd.xlane.f32.xlu0 %v556
    %v558 = vpop.xlane.xlu0 %557
    %v559 = vsel %vm270, %v238, 0.0
    %560 = vadd.xlane.f32.xlu0 %v559
    %v561 = vpop.xlane.xlu0 %560
    %v562 = vsel %vm270, %v239, 0.0
    %563 = vadd.xlane.f32.xlu0 %v562
    %v564 = vpop.xlane.xlu0 %563
    %v565 = vsel %vm270, %v240, 0.0
    %566 = vadd.xlane.f32.xlu0 %v565
    %v567 = vpop.xlane.xlu0 %566
    %v568 = vsel %vm270, %v241, 0.0
    %569 = vadd.xlane.f32.xlu0 %v568
    %v570 = vpop.xlane.xlu0 %569
    %v571 = vsel %vm270, %v242, 0.0
    %572 = vadd.xlane.f32.xlu0 %v571
    %v573 = vpop.xlane.xlu0 %572
    %v574 = vsel %vm270, %v243, 0.0
    %575 = vadd.xlane.f32.xlu0 %v574
    %v576 = vpop.xlane.xlu0 %575
    %v577 = vsel %vm270, %v244, 0.0
    %578 = vadd.xlane.f32.xlu0 %v577
    %v579 = vpop.xlane.xlu0 %578
    %v580 = vsel %vm270, %v245, 0.0
    %581 = vadd.xlane.f32.xlu0 %v580
    %v582 = vpop.xlane.xlu0 %581
    %v583 = vsel %vm270, %v246, 0.0
    %584 = vadd.xlane.f32.xlu0 %v583
    %v585 = vpop.xlane.xlu0 %584
    %v586 = vsel %vm270, %v247, 0.0
    %587 = vadd.xlane.f32.xlu0 %v586
    %v588 = vpop.xlane.xlu0 %587
    %v589 = vsel %vm270, %v248, 0.0
    %590 = vadd.xlane.f32.xlu0 %v589
    %v591 = vpop.xlane.xlu0 %590
    %v592 = vsel %vm270, %v249, 0.0
    %593 = vadd.xlane.f32.xlu0 %v592
    %v594 = vpop.xlane.xlu0 %593
    %v595 = vsel %vm270, %v250, 0.0
    %596 = vadd.xlane.f32.xlu0 %v595
    %v597 = vpop.xlane.xlu0 %596
    %v598 = vsel %vm270, %v251, 0.0
    %599 = vadd.xlane.f32.xlu0 %v598
    %v600 = vpop.xlane.xlu0 %599
    %v601 = vsel %vm270, %v252, 0.0
    %602 = vadd.xlane.f32.xlu0 %v601
    %v603 = vpop.xlane.xlu0 %602
    %v604 = vsel %vm270, %v253, 0.0
    %605 = vadd.xlane.f32.xlu0 %v604
    %v606 = vpop.xlane.xlu0 %605
    %v607 = vsel %vm270, %v254, 0.0
    %608 = vadd.xlane.f32.xlu0 %v607
    %v609 = vpop.xlane.xlu0 %608
    %v610 = vsel %vm270, %v255, 0.0
    %611 = vadd.xlane.f32.xlu0 %v610
    %v612 = vpop.xlane.xlu0 %611
    %v613 = vsel %vm270, %v256, 0.0
    %614 = vadd.xlane.f32.xlu0 %v613
    %v615 = vpop.xlane.xlu0 %614
    %v616 = vsel %vm270, %v257, 0.0
    %617 = vadd.xlane.f32.xlu0 %v616
    %v618 = vpop.xlane.xlu0 %617
    %v619 = vsel %vm270, %v258, 0.0
    %620 = vadd.xlane.f32.xlu0 %v619
    %v621 = vpop.xlane.xlu0 %620
    %v622 = vsel %vm270, %v259, 0.0
    %623 = vadd.xlane.f32.xlu0 %v622
    %v624 = vpop.xlane.xlu0 %623
    %v625 = vsel %vm270, %v260, 0.0
    %626 = vadd.xlane.f32.xlu0 %v625
    %v627 = vpop.xlane.xlu0 %626
    %v628 = vsel %vm270, %v261, 0.0
    %629 = vadd.xlane.f32.xlu0 %v628
    %v630 = vpop.xlane.xlu0 %629
    %v631 = vsel %vm270, %v262, 0.0
    %632 = vadd.xlane.f32.xlu0 %v631
    %v633 = vpop.xlane.xlu0 %632
    %v634 = vsel %vm270, %v263, 0.0
    %635 = vadd.xlane.f32.xlu0 %v634
    %v636 = vpop.xlane.xlu0 %635
    %v637 = vsel %vm270, %v264, 0.0
    %638 = vadd.xlane.f32.xlu0 %v637
    %v639 = vpop.xlane.xlu0 %638
    %v640 = vsel %vm270, %v265, 0.0
    %641 = vadd.xlane.f32.xlu0 %v640
    %v642 = vpop.xlane.xlu0 %641
    %v643 = vsel %vm270, %v266, 0.0
    %644 = vadd.xlane.f32.xlu0 %v643
    %v645 = vpop.xlane.xlu0 %644
    %v646 = vsel %vm270, %v267, 0.0
    %647 = vadd.xlane.f32.xlu0 %v646
    %v648 = vpop.xlane.xlu0 %647
    %v649 = vsel %vm270, %v268, 0.0
    %650 = vadd.xlane.f32.xlu0 %v649
    %v651 = vpop.xlane.xlu0 %650
    %v652 = vsel %vm270, %v269, 0.0
    %653 = vadd.xlane.f32.xlu0 %v652
    %v654 = vpop.xlane.xlu0 %653
    %v783 = vlaneseq
    %v784 = vshrl.u32 %v783, 7
    %v785 = vsub.s32 %v10, %v784
    %v786 = vrot.slane %v273, %v785
    %v787 = vadd.s32 %v10, 4294967288
    %v788 = vlaneseq
    %v789 = vshrl.u32 %v788, 7
    %v790 = vsub.s32 %v787, %v789
    %v791 = vrot.slane %v276, %v790
    %vm792 = vcmask 130112
    %v793 = vsel %vm792, %v791, %v786
    %v794 = vadd.s32 %v10, 4294967280
    %v795 = vlaneseq
    %v796 = vshrl.u32 %v795, 7
    %v797 = vsub.s32 %v794, %v796
    %v798 = vrot.slane %v279, %v797
    %vm799 = vcmask 195712
    %v800 = vsel %vm799, %v798, %v793
    %v801 = vadd.s32 %v10, 4294967272
    %v802 = vlaneseq
    %v803 = vshrl.u32 %v802, 7
    %v804 = vsub.s32 %v801, %v803
    %v805 = vrot.slane %v282, %v804
    %vm806 = vcmask 261312
    %v807 = vsel %vm806, %v805, %v800
    %v808 = vadd.s32 %v10, 4294967264
    %v809 = vlaneseq
    %v810 = vshrl.u32 %v809, 7
    %v811 = vsub.s32 %v808, %v810
    %v812 = vrot.slane %v285, %v811
    %vm813 = vcmask 326912
    %v814 = vsel %vm813, %v812, %v807
    %v815 = vadd.s32 %v10, 4294967256
    %v816 = vlaneseq
    %v817 = vshrl.u32 %v816, 7
    %v818 = vsub.s32 %v815, %v817
    %v819 = vrot.slane %v288, %v818
    %vm820 = vcmask 392512
    %v821 = vsel %vm820, %v819, %v814
    %v822 = vadd.s32 %v10, 4294967248
    %v823 = vlaneseq
    %v824 = vshrl.u32 %v823, 7
    %v825 = vsub.s32 %v822, %v824
    %v826 = vrot.slane %v291, %v825
    %vm827 = vcmask 458112
    %v828 = vsel %vm827, %v826, %v821
    %v829 = vadd.s32 %v10, 4294967240
    %v830 = vlaneseq
    %v831 = vshrl.u32 %v830, 7
    %v832 = vsub.s32 %v829, %v831
    %v833 = vrot.slane %v294, %v832
    %vm834 = vcmask 523712
    %v835 = vsel %vm834, %v833, %v828
    %v836 = vadd.s32 %v10, 4294967232
    %v837 = vlaneseq
    %v838 = vshrl.u32 %v837, 7
    %v839 = vsub.s32 %v836, %v838
    %v840 = vrot.slane %v297, %v839
    %vm841 = vcmask 589312
    %v842 = vsel %vm841, %v840, %v835
    %v843 = vadd.s32 %v10, 4294967224
    %v844 = vlaneseq
    %v845 = vshrl.u32 %v844, 7
    %v846 = vsub.s32 %v843, %v845
    %v847 = vrot.slane %v300, %v846
    %vm848 = vcmask 654912
    %v849 = vsel %vm848, %v847, %v842
    %v850 = vadd.s32 %v10, 4294967216
    %v851 = vlaneseq
    %v852 = vshrl.u32 %v851, 7
    %v853 = vsub.s32 %v850, %v852
    %v854 = vrot.slane %v303, %v853
    %vm855 = vcmask 720512
    %v856 = vsel %vm855, %v854, %v849
    %v857 = vadd.s32 %v10, 4294967208
    %v858 = vlaneseq
    %v859 = vshrl.u32 %v858, 7
    %v860 = vsub.s32 %v857, %v859
    %v861 = vrot.slane %v306, %v860
    %vm862 = vcmask 786112
    %v863 = vsel %vm862, %v861, %v856
    %v864 = vadd.s32 %v10, 4294967200
    %v865 = vlaneseq
    %v866 = vshrl.u32 %v865, 7
    %v867 = vsub.s32 %v864, %v866
    %v868 = vrot.slane %v309, %v867
    %vm869 = vcmask 851712
    %v870 = vsel %vm869, %v868, %v863
    %v871 = vadd.s32 %v10, 4294967192
    %v872 = vlaneseq
    %v873 = vshrl.u32 %v872, 7
    %v874 = vsub.s32 %v871, %v873
    %v875 = vrot.slane %v312, %v874
    %vm876 = vcmask 917312
    %v877 = vsel %vm876, %v875, %v870
    %v878 = vadd.s32 %v10, 4294967184
    %v879 = vlaneseq
    %v880 = vshrl.u32 %v879, 7
    %v881 = vsub.s32 %v878, %v880
    %v882 = vrot.slane %v315, %v881
    %vm883 = vcmask 982912
    %v884 = vsel %vm883, %v882, %v877
    %v885 = vadd.s32 %v10, 4294967176
    %v886 = vlaneseq
    %v887 = vshrl.u32 %v886, 7
    %v888 = vsub.s32 %v885, %v887
    %v889 = vrot.slane %v318, %v888
    %vm890 = vcmask 1048512
    %v891 = vsel %vm890, %v889, %v884
    %v892 = vlaneseq
    %v893 = vshrl.u32 %v892, 7
    %v894 = vsub.s32 %v10, %v893
    %v895 = vrot.slane %v321, %v894
    %v896 = vlaneseq
    %v897 = vshrl.u32 %v896, 7
    %v898 = vsub.s32 %v787, %v897
    %v899 = vrot.slane %v324, %v898
    %v900 = vsel %vm792, %v899, %v895
    %v901 = vlaneseq
    %v902 = vshrl.u32 %v901, 7
    %v903 = vsub.s32 %v794, %v902
    %v904 = vrot.slane %v327, %v903
    %v905 = vsel %vm799, %v904, %v900
    %v906 = vlaneseq
    %v907 = vshrl.u32 %v906, 7
    %v908 = vsub.s32 %v801, %v907
    %v909 = vrot.slane %v330, %v908
    %v910 = vsel %vm806, %v909, %v905
    %v911 = vlaneseq
    %v912 = vshrl.u32 %v911, 7
    %v913 = vsub.s32 %v808, %v912
    %v914 = vrot.slane %v333, %v913
    %v915 = vsel %vm813, %v914, %v910
    %v916 = vlaneseq
    %v917 = vshrl.u32 %v916, 7
    %v918 = vsub.s32 %v815, %v917
    %v919 = vrot.slane %v336, %v918
    %v920 = vsel %vm820, %v919, %v915
    %v921 = vlaneseq
    %v922 = vshrl.u32 %v921, 7
    %v923 = vsub.s32 %v822, %v922
    %v924 = vrot.slane %v339, %v923
    %v925 = vsel %vm827, %v924, %v920
    %v926 = vlaneseq
    %v927 = vshrl.u32 %v926, 7
    %v928 = vsub.s32 %v829, %v927
    %v929 = vrot.slane %v342, %v928
    %v930 = vsel %vm834, %v929, %v925
    %v931 = vlaneseq
    %v932 = vshrl.u32 %v931, 7
    %v933 = vsub.s32 %v836, %v932
    %v934 = vrot.slane %v345, %v933
    %v935 = vsel %vm841, %v934, %v930
    %v936 = vlaneseq
    %v937 = vshrl.u32 %v936, 7
    %v938 = vsub.s32 %v843, %v937
    %v939 = vrot.slane %v348, %v938
    %v940 = vsel %vm848, %v939, %v935
    %v941 = vlaneseq
    %v942 = vshrl.u32 %v941, 7
    %v943 = vsub.s32 %v850, %v942
    %v944 = vrot.slane %v351, %v943
    %v945 = vsel %vm855, %v944, %v940
    %v946 = vlaneseq
    %v947 = vshrl.u32 %v946, 7
    %v948 = vsub.s32 %v857, %v947
    %v949 = vrot.slane %v354, %v948
    %v950 = vsel %vm862, %v949, %v945
    %v951 = vlaneseq
    %v952 = vshrl.u32 %v951, 7
    %v953 = vsub.s32 %v864, %v952
    %v954 = vrot.slane %v357, %v953
    %v955 = vsel %vm869, %v954, %v950
    %v956 = vlaneseq
    %v957 = vshrl.u32 %v956, 7
    %v958 = vsub.s32 %v871, %v957
    %v959 = vrot.slane %v360, %v958
    %v960 = vsel %vm876, %v959, %v955
    %v961 = vlaneseq
    %v962 = vshrl.u32 %v961, 7
    %v963 = vsub.s32 %v878, %v962
    %v964 = vrot.slane %v363, %v963
    %v965 = vsel %vm883, %v964, %v960
    %v966 = vlaneseq
    %v967 = vshrl.u32 %v966, 7
    %v968 = vsub.s32 %v885, %v967
    %v969 = vrot.slane %v366, %v968
    %v970 = vsel %vm890, %v969, %v965
    %v971 = vlaneseq
    %v972 = vshrl.u32 %v971, 7
    %v973 = vsub.s32 %v10, %v972
    %v974 = vrot.slane %v369, %v973
    %v975 = vlaneseq
    %v976 = vshrl.u32 %v975, 7
    %v977 = vsub.s32 %v787, %v976
    %v978 = vrot.slane %v372, %v977
    %v979 = vsel %vm792, %v978, %v974
    %v980 = vlaneseq
    %v981 = vshrl.u32 %v980, 7
    %v982 = vsub.s32 %v794, %v981
    %v983 = vrot.slane %v375, %v982
    %v984 = vsel %vm799, %v983, %v979
    %v985 = vlaneseq
    %v986 = vshrl.u32 %v985, 7
    %v987 = vsub.s32 %v801, %v986
    %v988 = vrot.slane %v378, %v987
    %v989 = vsel %vm806, %v988, %v984
    %v990 = vlaneseq
    %v991 = vshrl.u32 %v990, 7
    %v992 = vsub.s32 %v808, %v991
    %v993 = vrot.slane %v381, %v992
    %v994 = vsel %vm813, %v993, %v989
    %v995 = vlaneseq
    %v996 = vshrl.u32 %v995, 7
    %v997 = vsub.s32 %v815, %v996
    %v998 = vrot.slane %v384, %v997
    %v999 = vsel %vm820, %v998, %v994
    %v1000 = vlaneseq
    %v1001 = vshrl.u32 %v1000, 7
    %v1002 = vsub.s32 %v822, %v1001
    %v1003 = vrot.slane %v387, %v1002
    %v1004 = vsel %vm827, %v1003, %v999
    %v1005 = vlaneseq
    %v1006 = vshrl.u32 %v1005, 7
    %v1007 = vsub.s32 %v829, %v1006
    %v1008 = vrot.slane %v390, %v1007
    %v1009 = vsel %vm834, %v1008, %v1004
    %v1010 = vlaneseq
    %v1011 = vshrl.u32 %v1010, 7
    %v1012 = vsub.s32 %v836, %v1011
    %v1013 = vrot.slane %v393, %v1012
    %v1014 = vsel %vm841, %v1013, %v1009
    %v1015 = vlaneseq
    %v1016 = vshrl.u32 %v1015, 7
    %v1017 = vsub.s32 %v843, %v1016
    %v1018 = vrot.slane %v396, %v1017
    %v1019 = vsel %vm848, %v1018, %v1014
    %v1020 = vlaneseq
    %v1021 = vshrl.u32 %v1020, 7
    %v1022 = vsub.s32 %v850, %v1021
    %v1023 = vrot.slane %v399, %v1022
    %v1024 = vsel %vm855, %v1023, %v1019
    %v1025 = vlaneseq
    %v1026 = vshrl.u32 %v1025, 7
    %v1027 = vsub.s32 %v857, %v1026
    %v1028 = vrot.slane %v402, %v1027
    %v1029 = vsel %vm862, %v1028, %v1024
    %v1030 = vlaneseq
    %v1031 = vshrl.u32 %v1030, 7
    %v1032 = vsub.s32 %v864, %v1031
    %v1033 = vrot.slane %v405, %v1032
    %v1034 = vsel %vm869, %v1033, %v1029
    %v1035 = vlaneseq
    %v1036 = vshrl.u32 %v1035, 7
    %v1037 = vsub.s32 %v871, %v1036
    %v1038 = vrot.slane %v408, %v1037
    %v1039 = vsel %vm876, %v1038, %v1034
    %v1040 = vlaneseq
    %v1041 = vshrl.u32 %v1040, 7
    %v1042 = vsub.s32 %v878, %v1041
    %v1043 = vrot.slane %v411, %v1042
    %v1044 = vsel %vm883, %v1043, %v1039
    %v1045 = vlaneseq
    %v1046 = vshrl.u32 %v1045, 7
    %v1047 = vsub.s32 %v885, %v1046
    %v1048 = vrot.slane %v414, %v1047
    %v1049 = vsel %vm890, %v1048, %v1044
    %v1050 = vlaneseq
    %v1051 = vshrl.u32 %v1050, 7
    %v1052 = vsub.s32 %v10, %v1051
    %v1053 = vrot.slane %v417, %v1052
    %v1054 = vlaneseq
    %v1055 = vshrl.u32 %v1054, 7
    %v1056 = vsub.s32 %v787, %v1055
    %v1057 = vrot.slane %v420, %v1056
    %v1058 = vsel %vm792, %v1057, %v1053
    %v1059 = vlaneseq
    %v1060 = vshrl.u32 %v1059, 7
    %v1061 = vsub.s32 %v794, %v1060
    %v1062 = vrot.slane %v423, %v1061
    %v1063 = vsel %vm799, %v1062, %v1058
    %v1064 = vlaneseq
    %v1065 = vshrl.u32 %v1064, 7
    %v1066 = vsub.s32 %v801, %v1065
    %v1067 = vrot.slane %v426, %v1066
    %v1068 = vsel %vm806, %v1067, %v1063
    %v1069 = vlaneseq
    %v1070 = vshrl.u32 %v1069, 7
    %v1071 = vsub.s32 %v808, %v1070
    %v1072 = vrot.slane %v429, %v1071
    %v1073 = vsel %vm813, %v1072, %v1068
    %v1074 = vlaneseq
    %v1075 = vshrl.u32 %v1074, 7
    %v1076 = vsub.s32 %v815, %v1075
    %v1077 = vrot.slane %v432, %v1076
    %v1078 = vsel %vm820, %v1077, %v1073
    %v1079 = vlaneseq
    %v1080 = vshrl.u32 %v1079, 7
    %v1081 = vsub.s32 %v822, %v1080
    %v1082 = vrot.slane %v435, %v1081
    %v1083 = vsel %vm827, %v1082, %v1078
    %v1084 = vlaneseq
    %v1085 = vshrl.u32 %v1084, 7
    %v1086 = vsub.s32 %v829, %v1085
    %v1087 = vrot.slane %v438, %v1086
    %v1088 = vsel %vm834, %v1087, %v1083
    %v1089 = vlaneseq
    %v1090 = vshrl.u32 %v1089, 7
    %v1091 = vsub.s32 %v836, %v1090
    %v1092 = vrot.slane %v441, %v1091
    %v1093 = vsel %vm841, %v1092, %v1088
    %v1094 = vlaneseq
    %v1095 = vshrl.u32 %v1094, 7
    %v1096 = vsub.s32 %v843, %v1095
    %v1097 = vrot.slane %v444, %v1096
    %v1098 = vsel %vm848, %v1097, %v1093
    %v1099 = vlaneseq
    %v1100 = vshrl.u32 %v1099, 7
    %v1101 = vsub.s32 %v850, %v1100
    %v1102 = vrot.slane %v447, %v1101
    %v1103 = vsel %vm855, %v1102, %v1098
    %v1104 = vlaneseq
    %v1105 = vshrl.u32 %v1104, 7
    %v1106 = vsub.s32 %v857, %v1105
    %v1107 = vrot.slane %v450, %v1106
    %v1108 = vsel %vm862, %v1107, %v1103
    %v1109 = vlaneseq
    %v1110 = vshrl.u32 %v1109, 7
    %v1111 = vsub.s32 %v864, %v1110
    %v1112 = vrot.slane %v453, %v1111
    %v1113 = vsel %vm869, %v1112, %v1108
    %v1114 = vlaneseq
    %v1115 = vshrl.u32 %v1114, 7
    %v1116 = vsub.s32 %v871, %v1115
    %v1117 = vrot.slane %v456, %v1116
    %v1118 = vsel %vm876, %v1117, %v1113
    %v1119 = vlaneseq
    %v1120 = vshrl.u32 %v1119, 7
    %v1121 = vsub.s32 %v878, %v1120
    %v1122 = vrot.slane %v459, %v1121
    %v1123 = vsel %vm883, %v1122, %v1118
    %v1124 = vlaneseq
    %v1125 = vshrl.u32 %v1124, 7
    %v1126 = vsub.s32 %v885, %v1125
    %v1127 = vrot.slane %v462, %v1126
    %v1128 = vsel %vm890, %v1127, %v1123
    %v1129 = vlaneseq
    %v1130 = vshrl.u32 %v1129, 7
    %v1131 = vsub.s32 %v10, %v1130
    %v1132 = vrot.slane %v465, %v1131
    %v1133 = vlaneseq
    %v1134 = vshrl.u32 %v1133, 7
    %v1135 = vsub.s32 %v787, %v1134
    %v1136 = vrot.slane %v468, %v1135
    %v1137 = vsel %vm792, %v1136, %v1132
    %v1138 = vlaneseq
    %v1139 = vshrl.u32 %v1138, 7
    %v1140 = vsub.s32 %v794, %v1139
    %v1141 = vrot.slane %v471, %v1140
    %v1142 = vsel %vm799, %v1141, %v1137
    %v1143 = vlaneseq
    %v1144 = vshrl.u32 %v1143, 7
    %v1145 = vsub.s32 %v801, %v1144
    %v1146 = vrot.slane %v474, %v1145
    %v1147 = vsel %vm806, %v1146, %v1142
    %v1148 = vlaneseq
    %v1149 = vshrl.u32 %v1148, 7
    %v1150 = vsub.s32 %v808, %v1149
    %v1151 = vrot.slane %v477, %v1150
    %v1152 = vsel %vm813, %v1151, %v1147
    %v1153 = vlaneseq
    %v1154 = vshrl.u32 %v1153, 7
    %v1155 = vsub.s32 %v815, %v1154
    %v1156 = vrot.slane %v480, %v1155
    %v1157 = vsel %vm820, %v1156, %v1152
    %v1158 = vlaneseq
    %v1159 = vshrl.u32 %v1158, 7
    %v1160 = vsub.s32 %v822, %v1159
    %v1161 = vrot.slane %v483, %v1160
    %v1162 = vsel %vm827, %v1161, %v1157
    %v1163 = vlaneseq
    %v1164 = vshrl.u32 %v1163, 7
    %v1165 = vsub.s32 %v829, %v1164
    %v1166 = vrot.slane %v486, %v1165
    %v1167 = vsel %vm834, %v1166, %v1162
    %v1168 = vlaneseq
    %v1169 = vshrl.u32 %v1168, 7
    %v1170 = vsub.s32 %v836, %v1169
    %v1171 = vrot.slane %v489, %v1170
    %v1172 = vsel %vm841, %v1171, %v1167
    %v1173 = vlaneseq
    %v1174 = vshrl.u32 %v1173, 7
    %v1175 = vsub.s32 %v843, %v1174
    %v1176 = vrot.slane %v492, %v1175
    %v1177 = vsel %vm848, %v1176, %v1172
    %v1178 = vlaneseq
    %v1179 = vshrl.u32 %v1178, 7
    %v1180 = vsub.s32 %v850, %v1179
    %v1181 = vrot.slane %v495, %v1180
    %v1182 = vsel %vm855, %v1181, %v1177
    %v1183 = vlaneseq
    %v1184 = vshrl.u32 %v1183, 7
    %v1185 = vsub.s32 %v857, %v1184
    %v1186 = vrot.slane %v498, %v1185
    %v1187 = vsel %vm862, %v1186, %v1182
    %v1188 = vlaneseq
    %v1189 = vshrl.u32 %v1188, 7
    %v1190 = vsub.s32 %v864, %v1189
    %v1191 = vrot.slane %v501, %v1190
    %v1192 = vsel %vm869, %v1191, %v1187
    %v1193 = vlaneseq
    %v1194 = vshrl.u32 %v1193, 7
    %v1195 = vsub.s32 %v871, %v1194
    %v1196 = vrot.slane %v504, %v1195
    %v1197 = vsel %vm876, %v1196, %v1192
    %v1198 = vlaneseq
    %v1199 = vshrl.u32 %v1198, 7
    %v1200 = vsub.s32 %v878, %v1199
    %v1201 = vrot.slane %v507, %v1200
    %v1202 = vsel %vm883, %v1201, %v1197
    %v1203 = vlaneseq
    %v1204 = vshrl.u32 %v1203, 7
    %v1205 = vsub.s32 %v885, %v1204
    %v1206 = vrot.slane %v510, %v1205
    %v1207 = vsel %vm890, %v1206, %v1202
    %v1208 = vlaneseq
    %v1209 = vshrl.u32 %v1208, 7
    %v1210 = vsub.s32 %v10, %v1209
    %v1211 = vrot.slane %v513, %v1210
    %v1212 = vlaneseq
    %v1213 = vshrl.u32 %v1212, 7
    %v1214 = vsub.s32 %v787, %v1213
    %v1215 = vrot.slane %v516, %v1214
    %v1216 = vsel %vm792, %v1215, %v1211
    %v1217 = vlaneseq
    %v1218 = vshrl.u32 %v1217, 7
    %v1219 = vsub.s32 %v794, %v1218
    %v1220 = vrot.slane %v519, %v1219
    %v1221 = vsel %vm799, %v1220, %v1216
    %v1222 = vlaneseq
    %v1223 = vshrl.u32 %v1222, 7
    %v1224 = vsub.s32 %v801, %v1223
    %v1225 = vrot.slane %v522, %v1224
    %v1226 = vsel %vm806, %v1225, %v1221
    %v1227 = vlaneseq
    %v1228 = vshrl.u32 %v1227, 7
    %v1229 = vsub.s32 %v808, %v1228
    %v1230 = vrot.slane %v525, %v1229
    %v1231 = vsel %vm813, %v1230, %v1226
    %v1232 = vlaneseq
    %v1233 = vshrl.u32 %v1232, 7
    %v1234 = vsub.s32 %v815, %v1233
    %v1235 = vrot.slane %v528, %v1234
    %v1236 = vsel %vm820, %v1235, %v1231
    %v1237 = vlaneseq
    %v1238 = vshrl.u32 %v1237, 7
    %v1239 = vsub.s32 %v822, %v1238
    %v1240 = vrot.slane %v531, %v1239
    %v1241 = vsel %vm827, %v1240, %v1236
    %v1242 = vlaneseq
    %v1243 = vshrl.u32 %v1242, 7
    %v1244 = vsub.s32 %v829, %v1243
    %v1245 = vrot.slane %v534, %v1244
    %v1246 = vsel %vm834, %v1245, %v1241
    %v1247 = vlaneseq
    %v1248 = vshrl.u32 %v1247, 7
    %v1249 = vsub.s32 %v836, %v1248
    %v1250 = vrot.slane %v537, %v1249
    %v1251 = vsel %vm841, %v1250, %v1246
    %v1252 = vlaneseq
    %v1253 = vshrl.u32 %v1252, 7
    %v1254 = vsub.s32 %v843, %v1253
    %v1255 = vrot.slane %v540, %v1254
    %v1256 = vsel %vm848, %v1255, %v1251
    %v1257 = vlaneseq
    %v1258 = vshrl.u32 %v1257, 7
    %v1259 = vsub.s32 %v850, %v1258
    %v1260 = vrot.slane %v543, %v1259
    %v1261 = vsel %vm855, %v1260, %v1256
    %v1262 = vlaneseq
    %v1263 = vshrl.u32 %v1262, 7
    %v1264 = vsub.s32 %v857, %v1263
    %v1265 = vrot.slane %v546, %v1264
    %v1266 = vsel %vm862, %v1265, %v1261
    %v1267 = vlaneseq
    %v1268 = vshrl.u32 %v1267, 7
    %v1269 = vsub.s32 %v864, %v1268
    %v1270 = vrot.slane %v549, %v1269
    %v1271 = vsel %vm869, %v1270, %v1266
    %v1272 = vlaneseq
    %v1273 = vshrl.u32 %v1272, 7
    %v1274 = vsub.s32 %v871, %v1273
    %v1275 = vrot.slane %v552, %v1274
    %v1276 = vsel %vm876, %v1275, %v1271
    %v1277 = vlaneseq
    %v1278 = vshrl.u32 %v1277, 7
    %v1279 = vsub.s32 %v878, %v1278
    %v1280 = vrot.slane %v555, %v1279
    %v1281 = vsel %vm883, %v1280, %v1276
    %v1282 = vlaneseq
    %v1283 = vshrl.u32 %v1282, 7
    %v1284 = vsub.s32 %v885, %v1283
    %v1285 = vrot.slane %v558, %v1284
    %v1286 = vsel %vm890, %v1285, %v1281
    %v1287 = vlaneseq
    %v1288 = vshrl.u32 %v1287, 7
    %v1289 = vsub.s32 %v10, %v1288
    %v1290 = vrot.slane %v561, %v1289
    %v1291 = vlaneseq
    %v1292 = vshrl.u32 %v1291, 7
    %v1293 = vsub.s32 %v787, %v1292
    %v1294 = vrot.slane %v564, %v1293
    %v1295 = vsel %vm792, %v1294, %v1290
    %v1296 = vlaneseq
    %v1297 = vshrl.u32 %v1296, 7
    %v1298 = vsub.s32 %v794, %v1297
    %v1299 = vrot.slane %v567, %v1298
    %v1300 = vsel %vm799, %v1299, %v1295
    %v1301 = vlaneseq
    %v1302 = vshrl.u32 %v1301, 7
    %v1303 = vsub.s32 %v801, %v1302
    %v1304 = vrot.slane %v570, %v1303
    %v1305 = vsel %vm806, %v1304, %v1300
    %v1306 = vlaneseq
    %v1307 = vshrl.u32 %v1306, 7
    %v1308 = vsub.s32 %v808, %v1307
    %v1309 = vrot.slane %v573, %v1308
    %v1310 = vsel %vm813, %v1309, %v1305
    %v1311 = vlaneseq
    %v1312 = vshrl.u32 %v1311, 7
    %v1313 = vsub.s32 %v815, %v1312
    %v1314 = vrot.slane %v576, %v1313
    %v1315 = vsel %vm820, %v1314, %v1310
    %v1316 = vlaneseq
    %v1317 = vshrl.u32 %v1316, 7
    %v1318 = vsub.s32 %v822, %v1317
    %v1319 = vrot.slane %v579, %v1318
    %v1320 = vsel %vm827, %v1319, %v1315
    %v1321 = vlaneseq
    %v1322 = vshrl.u32 %v1321, 7
    %v1323 = vsub.s32 %v829, %v1322
    %v1324 = vrot.slane %v582, %v1323
    %v1325 = vsel %vm834, %v1324, %v1320
    %v1326 = vlaneseq
    %v1327 = vshrl.u32 %v1326, 7
    %v1328 = vsub.s32 %v836, %v1327
    %v1329 = vrot.slane %v585, %v1328
    %v1330 = vsel %vm841, %v1329, %v1325
    %v1331 = vlaneseq
    %v1332 = vshrl.u32 %v1331, 7
    %v1333 = vsub.s32 %v843, %v1332
    %v1334 = vrot.slane %v588, %v1333
    %v1335 = vsel %vm848, %v1334, %v1330
    %v1336 = vlaneseq
    %v1337 = vshrl.u32 %v1336, 7
    %v1338 = vsub.s32 %v850, %v1337
    %v1339 = vrot.slane %v591, %v1338
    %v1340 = vsel %vm855, %v1339, %v1335
    %v1341 = vlaneseq
    %v1342 = vshrl.u32 %v1341, 7
    %v1343 = vsub.s32 %v857, %v1342
    %v1344 = vrot.slane %v594, %v1343
    %v1345 = vsel %vm862, %v1344, %v1340
    %v1346 = vlaneseq
    %v1347 = vshrl.u32 %v1346, 7
    %v1348 = vsub.s32 %v864, %v1347
    %v1349 = vrot.slane %v597, %v1348
    %v1350 = vsel %vm869, %v1349, %v1345
    %v1351 = vlaneseq
    %v1352 = vshrl.u32 %v1351, 7
    %v1353 = vsub.s32 %v871, %v1352
    %v1354 = vrot.slane %v600, %v1353
    %v1355 = vsel %vm876, %v1354, %v1350
    %v1356 = vlaneseq
    %v1357 = vshrl.u32 %v1356, 7
    %v1358 = vsub.s32 %v878, %v1357
    %v1359 = vrot.slane %v603, %v1358
    %v1360 = vsel %vm883, %v1359, %v1355
    %v1361 = vlaneseq
    %v1362 = vshrl.u32 %v1361, 7
    %v1363 = vsub.s32 %v885, %v1362
    %v1364 = vrot.slane %v606, %v1363
    %v1365 = vsel %vm890, %v1364, %v1360
    %v1366 = vlaneseq
    %v1367 = vshrl.u32 %v1366, 7
    %v1368 = vsub.s32 %v10, %v1367
    %v1369 = vrot.slane %v609, %v1368
    %v1370 = vlaneseq
    %v1371 = vshrl.u32 %v1370, 7
    %v1372 = vsub.s32 %v787, %v1371
    %v1373 = vrot.slane %v612, %v1372
    %v1374 = vsel %vm792, %v1373, %v1369
    %v1375 = vlaneseq
    %v1376 = vshrl.u32 %v1375, 7
    %v1377 = vsub.s32 %v794, %v1376
    %v1378 = vrot.slane %v615, %v1377
    %v1379 = vsel %vm799, %v1378, %v1374
    %v1380 = vlaneseq
    %v1381 = vshrl.u32 %v1380, 7
    %v1382 = vsub.s32 %v801, %v1381
    %v1383 = vrot.slane %v618, %v1382
    %v1384 = vsel %vm806, %v1383, %v1379
    %v1385 = vlaneseq
    %v1386 = vshrl.u32 %v1385, 7
    %v1387 = vsub.s32 %v808, %v1386
    %v1388 = vrot.slane %v621, %v1387
    %v1389 = vsel %vm813, %v1388, %v1384
    %v1390 = vlaneseq
    %v1391 = vshrl.u32 %v1390, 7
    %v1392 = vsub.s32 %v815, %v1391
    %v1393 = vrot.slane %v624, %v1392
    %v1394 = vsel %vm820, %v1393, %v1389
    %v1395 = vlaneseq
    %v1396 = vshrl.u32 %v1395, 7
    %v1397 = vsub.s32 %v822, %v1396
    %v1398 = vrot.slane %v627, %v1397
    %v1399 = vsel %vm827, %v1398, %v1394
    %v1400 = vlaneseq
    %v1401 = vshrl.u32 %v1400, 7
    %v1402 = vsub.s32 %v829, %v1401
    %v1403 = vrot.slane %v630, %v1402
    %v1404 = vsel %vm834, %v1403, %v1399
    %v1405 = vlaneseq
    %v1406 = vshrl.u32 %v1405, 7
    %v1407 = vsub.s32 %v836, %v1406
    %v1408 = vrot.slane %v633, %v1407
    %v1409 = vsel %vm841, %v1408, %v1404
    %v1410 = vlaneseq
    %v1411 = vshrl.u32 %v1410, 7
    %v1412 = vsub.s32 %v843, %v1411
    %v1413 = vrot.slane %v636, %v1412
    %v1414 = vsel %vm848, %v1413, %v1409
    %v1415 = vlaneseq
    %v1416 = vshrl.u32 %v1415, 7
    %v1417 = vsub.s32 %v850, %v1416
    %v1418 = vrot.slane %v639, %v1417
    %v1419 = vsel %vm855, %v1418, %v1414
    %v1420 = vlaneseq
    %v1421 = vshrl.u32 %v1420, 7
    %v1422 = vsub.s32 %v857, %v1421
    %v1423 = vrot.slane %v642, %v1422
    %v1424 = vsel %vm862, %v1423, %v1419
    %v1425 = vlaneseq
    %v1426 = vshrl.u32 %v1425, 7
    %v1427 = vsub.s32 %v864, %v1426
    %v1428 = vrot.slane %v645, %v1427
    %v1429 = vsel %vm869, %v1428, %v1424
    %v1430 = vlaneseq
    %v1431 = vshrl.u32 %v1430, 7
    %v1432 = vsub.s32 %v871, %v1431
    %v1433 = vrot.slane %v648, %v1432
    %v1434 = vsel %vm876, %v1433, %v1429
    %v1435 = vlaneseq
    %v1436 = vshrl.u32 %v1435, 7
    %v1437 = vsub.s32 %v878, %v1436
    %v1438 = vrot.slane %v651, %v1437
    %v1439 = vsel %vm883, %v1438, %v1434
    %v1440 = vlaneseq
    %v1441 = vshrl.u32 %v1440, 7
    %v1442 = vsub.s32 %v885, %v1441
    %v1443 = vrot.slane %v654, %v1442
    %v1444 = vsel %vm890, %v1443, %v1439
    %vm1445 = vcmask 1041409
    %v1446 = vsel %vm1445, %v970, %v891
    %vm1447 = vcmask 1042434
    %v1448 = vsel %vm1447, %v1049, %v1446
    %vm1449 = vcmask 1043459
    %v1450 = vsel %vm1449, %v1128, %v1448
    %vm1451 = vcmask 1044484
    %v1452 = vsel %vm1451, %v1207, %v1450
    %vm1453 = vcmask 1045509
    %v1454 = vsel %vm1453, %v1286, %v1452
    %vm1455 = vcmask 1046534
    %v1456 = vsel %vm1455, %v1365, %v1454
    %vm1457 = vcmask 1047559
    %v1458 = vsel %vm1457, %v1444, %v1456
    %1460 = vst [vmem:[#allocation2] sm:$0xff] %v1458
    // Predicated region
    $region6: #{tpu_custom_call.1} parent=1 // pred_check
      _
    $region7: #{tpu_custom_call.1} parent=1 // pred_check_branch
      %1462 = sbr.rel (0) target = $region9
    $region8: #{tpu_custom_call.1} parent=1 // pred_region
      %s1464 = ssub.s32 128, 128
      %1465 = vsyncadd [#allocation3], %s1464
      %s1467 = sshll.u32 [#allocation2], 4
      %s1468 = int_to_ptr.vmem [resolvable:$true] %s1467
      %1470 = dma.vmem_to_hbm [thread:$0]  %s1468, 128, %s1, [#allocation3]
    $region9: #{tpu_custom_call.1} parent=1 // pred_fallthru
      _
    // Predicated region
    $region10: #{tpu_custom_call.1} parent=1 // pred_check
      _
    $region11: #{tpu_custom_call.1} parent=1 // pred_check_branch
      %1472 = sbr.rel (0) target = $region13
    $region12: #{tpu_custom_call.1} parent=1 // pred_region
      %1473 = dma.done [#allocation3], 128
    $region13: #{tpu_custom_call.1} parent=1 // pred_fallthru
      _
    %1474 = vsyncpa [#allocation3], 1

// kernel: tpu_custom_call.1
$region0: #{tpu_custom_call.1}
  #allocation0 [shape = 'u32[]', space=smem, size = 0x4, offset = 0x4, fixed_abs, tag = 'smem constant byte address 0x4 - core index']
  #allocation1 [shape = 'u32[144,128]{1,0:T(1,128)}', space=vmem, size = 0x12000, scoped, tag = 'internal scratch']
  %s0 = inlined_call_operand.vmem [shape: f32[1024,51], index: 0, kind: input, shape index: {}]
  %s1 = inlined_call_operand.vmem [shape: f32[1024,1], index: 1, kind: output, shape index: {}]
  %s2 = sld [smem:[#allocation0]]
  $region14: #{tpu_custom_call.1} parent=0
    _
  %s4 = ssub.s32 1, %s2
  %s5 = scalar_select 0, %s4, %s2
  // Predicated region
  $region2: #{tpu_custom_call.1} parent=0 // pred_check
    _
  $region3: #{tpu_custom_call.1} parent=0 // pred_check_branch
    %7 = sbr.rel (0) target = $region5
  $region4: #{tpu_custom_call.1} parent=0 // pred_region
    _
  $region5: #{tpu_custom_call.1} parent=0 // pred_fallthru
    _
  %v8 = vlaneseq
  %v9 = vand.u32 %v8, 127
  %v10 = vcvt.s32.f32 %v9
  %v11 = vmul.f32 %v10, 0.4
  %v12 = vadd.f32 %v11, -10.0
  %v13 = vld [vmem:[%s0] sm:$0xff]
  %v14 = vld [vmem:[%s0 + $0x8] sm:$0xff]
  %v15 = vld [vmem:[%s0 + $0x10] sm:$0xff]
  %v16 = vld [vmem:[%s0 + $0x18] sm:$0xff]
  %v17 = vld [vmem:[%s0 + $0x20] sm:$0xff]
  %v18 = vld [vmem:[%s0 + $0x28] sm:$0xff]
  %v19 = vld [vmem:[%s0 + $0x30] sm:$0xff]
  %v20 = vld [vmem:[%s0 + $0x38] sm:$0xff]
  %v21 = vld [vmem:[%s0 + $0x40] sm:$0xff]
  %v22 = vld [vmem:[%s0 + $0x48] sm:$0xff]
  %v23 = vld [vmem:[%s0 + $0x50] sm:$0xff]
  %v24 = vld [vmem:[%s0 + $0x58] sm:$0xff]
  %v25 = vld [vmem:[%s0 + $0x60] sm:$0xff]
  %v26 = vld [vmem:[%s0 + $0x68] sm:$0xff]
  %v27 = vld [vmem:[%s0 + $0x70] sm:$0xff]
  %v28 = vld [vmem:[%s0 + $0x78] sm:$0xff]
  %v29 = vld [vmem:[%s0 + $0x80] sm:$0xff]
  %v30 = vld [vmem:[%s0 + $0x88] sm:$0xff]
  %v31 = vld [vmem:[%s0 + $0x90] sm:$0xff]
  %v32 = vld [vmem:[%s0 + $0x98] sm:$0xff]
  %v33 = vld [vmem:[%s0 + $0xa0] sm:$0xff]
  %v34 = vld [vmem:[%s0 + $0xa8] sm:$0xff]
  %v35 = vld [vmem:[%s0 + $0xb0] sm:$0xff]
  %v36 = vld [vmem:[%s0 + $0xb8] sm:$0xff]
  %v37 = vld [vmem:[%s0 + $0xc0] sm:$0xff]
  %v38 = vld [vmem:[%s0 + $0xc8] sm:$0xff]
  %v39 = vld [vmem:[%s0 + $0xd0] sm:$0xff]
  %v40 = vld [vmem:[%s0 + $0xd8] sm:$0xff]
  %v41 = vld [vmem:[%s0 + $0xe0] sm:$0xff]
  %v42 = vld [vmem:[%s0 + $0xe8] sm:$0xff]
  %v43 = vld [vmem:[%s0 + $0xf0] sm:$0xff]
  %v44 = vld [vmem:[%s0 + $0xf8] sm:$0xff]
  %v45 = vld [vmem:[%s0 + $0x100] sm:$0xff]
  %v46 = vld [vmem:[%s0 + $0x108] sm:$0xff]
  %v47 = vld [vmem:[%s0 + $0x110] sm:$0xff]
  %v48 = vld [vmem:[%s0 + $0x118] sm:$0xff]
  %v49 = vld [vmem:[%s0 + $0x120] sm:$0xff]
  %v50 = vld [vmem:[%s0 + $0x128] sm:$0xff]
  %v51 = vld [vmem:[%s0 + $0x130] sm:$0xff]
  %v52 = vld [vmem:[%s0 + $0x138] sm:$0xff]
  %v53 = vld [vmem:[%s0 + $0x140] sm:$0xff]
  %v54 = vld [vmem:[%s0 + $0x148] sm:$0xff]
  %v55 = vld [vmem:[%s0 + $0x150] sm:$0xff]
  %v56 = vld [vmem:[%s0 + $0x158] sm:$0xff]
  %v57 = vld [vmem:[%s0 + $0x160] sm:$0xff]
  %v58 = vld [vmem:[%s0 + $0x168] sm:$0xff]
  %v59 = vld [vmem:[%s0 + $0x170] sm:$0xff]
  %v60 = vld [vmem:[%s0 + $0x178] sm:$0xff]
  %v61 = vld [vmem:[%s0 + $0x180] sm:$0xff]
  %v62 = vld [vmem:[%s0 + $0x188] sm:$0xff]
  %v63 = vld [vmem:[%s0 + $0x190] sm:$0xff]
  %v64 = vld [vmem:[%s0 + $0x198] sm:$0xff]
  %v65 = vld [vmem:[%s0 + $0x1a0] sm:$0xff]
  %v66 = vld [vmem:[%s0 + $0x1a8] sm:$0xff]
  %v67 = vld [vmem:[%s0 + $0x1b0] sm:$0xff]
  %v68 = vld [vmem:[%s0 + $0x1b8] sm:$0xff]
  %v69 = vld [vmem:[%s0 + $0x1c0] sm:$0xff]
  %v70 = vld [vmem:[%s0 + $0x1c8] sm:$0xff]
  %v71 = vld [vmem:[%s0 + $0x1d0] sm:$0xff]
  %v72 = vld [vmem:[%s0 + $0x1d8] sm:$0xff]
  %v73 = vld [vmem:[%s0 + $0x1e0] sm:$0xff]
  %v74 = vld [vmem:[%s0 + $0x1e8] sm:$0xff]
  %v75 = vld [vmem:[%s0 + $0x1f0] sm:$0xff]
  %v76 = vld [vmem:[%s0 + $0x1f8] sm:$0xff]
  %v77 = vld [vmem:[%s0 + $0x200] sm:$0xff]
  %v78 = vld [vmem:[%s0 + $0x208] sm:$0xff]
  %v79 = vld [vmem:[%s0 + $0x210] sm:$0xff]
  %v80 = vld [vmem:[%s0 + $0x218] sm:$0xff]
  %v81 = vld [vmem:[%s0 + $0x220] sm:$0xff]
  %v82 = vld [vmem:[%s0 + $0x228] sm:$0xff]
  %v83 = vld [vmem:[%s0 + $0x230] sm:$0xff]
  %v84 = vld [vmem:[%s0 + $0x238] sm:$0xff]
  %v85 = vld [vmem:[%s0 + $0x240] sm:$0xff]
  %v86 = vld [vmem:[%s0 + $0x248] sm:$0xff]
  %v87 = vld [vmem:[%s0 + $0x250] sm:$0xff]
  %v88 = vld [vmem:[%s0 + $0x258] sm:$0xff]
  %v89 = vld [vmem:[%s0 + $0x260] sm:$0xff]
  %v90 = vld [vmem:[%s0 + $0x268] sm:$0xff]
  %v91 = vld [vmem:[%s0 + $0x270] sm:$0xff]
  %v92 = vld [vmem:[%s0 + $0x278] sm:$0xff]
  %v93 = vld [vmem:[%s0 + $0x280] sm:$0xff]
  %v94 = vld [vmem:[%s0 + $0x288] sm:$0xff]
  %v95 = vld [vmem:[%s0 + $0x290] sm:$0xff]
  %v96 = vld [vmem:[%s0 + $0x298] sm:$0xff]
  %v97 = vld [vmem:[%s0 + $0x2a0] sm:$0xff]
  %v98 = vld [vmem:[%s0 + $0x2a8] sm:$0xff]
  %v99 = vld [vmem:[%s0 + $0x2b0] sm:$0xff]
  %v100 = vld [vmem:[%s0 + $0x2b8] sm:$0xff]
  %v101 = vld [vmem:[%s0 + $0x2c0] sm:$0xff]
  %v102 = vld [vmem:[%s0 + $0x2c8] sm:$0xff]
  %v103 = vld [vmem:[%s0 + $0x2d0] sm:$0xff]
  %v104 = vld [vmem:[%s0 + $0x2d8] sm:$0xff]
  %v105 = vld [vmem:[%s0 + $0x2e0] sm:$0xff]
  %v106 = vld [vmem:[%s0 + $0x2e8] sm:$0xff]
  %v107 = vld [vmem:[%s0 + $0x2f0] sm:$0xff]
  %v108 = vld [vmem:[%s0 + $0x2f8] sm:$0xff]
  %v109 = vld [vmem:[%s0 + $0x300] sm:$0xff]
  %v110 = vld [vmem:[%s0 + $0x308] sm:$0xff]
  %v111 = vld [vmem:[%s0 + $0x310] sm:$0xff]
  %v112 = vld [vmem:[%s0 + $0x318] sm:$0xff]
  %v113 = vld [vmem:[%s0 + $0x320] sm:$0xff]
  %v114 = vld [vmem:[%s0 + $0x328] sm:$0xff]
  %v115 = vld [vmem:[%s0 + $0x330] sm:$0xff]
  %v116 = vld [vmem:[%s0 + $0x338] sm:$0xff]
  %v117 = vld [vmem:[%s0 + $0x340] sm:$0xff]
  %v118 = vld [vmem:[%s0 + $0x348] sm:$0xff]
  %v119 = vld [vmem:[%s0 + $0x350] sm:$0xff]
  %v120 = vld [vmem:[%s0 + $0x358] sm:$0xff]
  %v121 = vld [vmem:[%s0 + $0x360] sm:$0xff]
  %v122 = vld [vmem:[%s0 + $0x368] sm:$0xff]
  %v123 = vld [vmem:[%s0 + $0x370] sm:$0xff]
  %v124 = vld [vmem:[%s0 + $0x378] sm:$0xff]
  %v125 = vld [vmem:[%s0 + $0x380] sm:$0xff]
  %v126 = vld [vmem:[%s0 + $0x388] sm:$0xff]
  %v127 = vld [vmem:[%s0 + $0x390] sm:$0xff]
  %v128 = vld [vmem:[%s0 + $0x398] sm:$0xff]
  %v129 = vld [vmem:[%s0 + $0x3a0] sm:$0xff]
  %v130 = vld [vmem:[%s0 + $0x3a8] sm:$0xff]
  %v131 = vld [vmem:[%s0 + $0x3b0] sm:$0xff]
  %v132 = vld [vmem:[%s0 + $0x3b8] sm:$0xff]
  %v133 = vld [vmem:[%s0 + $0x3c0] sm:$0xff]
  %v134 = vld [vmem:[%s0 + $0x3c8] sm:$0xff]
  %v135 = vld [vmem:[%s0 + $0x3d0] sm:$0xff]
  %v136 = vld [vmem:[%s0 + $0x3d8] sm:$0xff]
  %v137 = vld [vmem:[%s0 + $0x3e0] sm:$0xff]
  %v138 = vld [vmem:[%s0 + $0x3e8] sm:$0xff]
  %v139 = vld [vmem:[%s0 + $0x3f0] sm:$0xff]
  %v140 = vld [vmem:[%s0 + $0x3f8] sm:$0xff]
  %v141 = vmul.f32 %v13, %v12
  %v142 = vmul.f32 %v14, %v12
  %v143 = vmul.f32 %v15, %v12
  %v144 = vmul.f32 %v16, %v12
  %v145 = vmul.f32 %v17, %v12
  %v146 = vmul.f32 %v18, %v12
  %v147 = vmul.f32 %v19, %v12
  %v148 = vmul.f32 %v20, %v12
  %v149 = vmul.f32 %v21, %v12
  %v150 = vmul.f32 %v22, %v12
  %v151 = vmul.f32 %v23, %v12
  %v152 = vmul.f32 %v24, %v12
  %v153 = vmul.f32 %v25, %v12
  %v154 = vmul.f32 %v26, %v12
  %v155 = vmul.f32 %v27, %v12
  %v156 = vmul.f32 %v28, %v12
  %v157 = vmul.f32 %v29, %v12
  %v158 = vmul.f32 %v30, %v12
  %v159 = vmul.f32 %v31, %v12
  %v160 = vmul.f32 %v32, %v12
  %v161 = vmul.f32 %v33, %v12
  %v162 = vmul.f32 %v34, %v12
  %v163 = vmul.f32 %v35, %v12
  %v164 = vmul.f32 %v36, %v12
  %v165 = vmul.f32 %v37, %v12
  %v166 = vmul.f32 %v38, %v12
  %v167 = vmul.f32 %v39, %v12
  %v168 = vmul.f32 %v40, %v12
  %v169 = vmul.f32 %v41, %v12
  %v170 = vmul.f32 %v42, %v12
  %v171 = vmul.f32 %v43, %v12
  %v172 = vmul.f32 %v44, %v12
  %v173 = vmul.f32 %v45, %v12
  %v174 = vmul.f32 %v46, %v12
  %v175 = vmul.f32 %v47, %v12
  %v176 = vmul.f32 %v48, %v12
  %v177 = vmul.f32 %v49, %v12
  %v178 = vmul.f32 %v50, %v12
  %v179 = vmul.f32 %v51, %v12
  %v180 = vmul.f32 %v52, %v12
  %v181 = vmul.f32 %v53, %v12
  %v182 = vmul.f32 %v54, %v12
  %v183 = vmul.f32 %v55, %v12
  %v184 = vmul.f32 %v56, %v12
  %v185 = vmul.f32 %v57, %v12
  %v186 = vmul.f32 %v58, %v12
  %v187 = vmul.f32 %v59, %v12
  %v188 = vmul.f32 %v60, %v12
  %v189 = vmul.f32 %v61, %v12
  %v190 = vmul.f32 %v62, %v12
  %v191 = vmul.f32 %v63, %v12
  %v192 = vmul.f32 %v64, %v12
  %v193 = vmul.f32 %v65, %v12
  %v194 = vmul.f32 %v66, %v12
  %v195 = vmul.f32 %v67, %v12
  %v196 = vmul.f32 %v68, %v12
  %v197 = vmul.f32 %v69, %v12
  %v198 = vmul.f32 %v70, %v12
  %v199 = vmul.f32 %v71, %v12
  %v200 = vmul.f32 %v72, %v12
  %v201 = vmul.f32 %v73, %v12
  %v202 = vmul.f32 %v74, %v12
  %v203 = vmul.f32 %v75, %v12
  %v204 = vmul.f32 %v76, %v12
  %v205 = vmul.f32 %v77, %v12
  %v206 = vmul.f32 %v78, %v12
  %v207 = vmul.f32 %v79, %v12
  %v208 = vmul.f32 %v80, %v12
  %v209 = vmul.f32 %v81, %v12
  %v210 = vmul.f32 %v82, %v12
  %v211 = vmul.f32 %v83, %v12
  %v212 = vmul.f32 %v84, %v12
  %v213 = vmul.f32 %v85, %v12
  %v214 = vmul.f32 %v86, %v12
  %v215 = vmul.f32 %v87, %v12
  %v216 = vmul.f32 %v88, %v12
  %v217 = vmul.f32 %v89, %v12
  %v218 = vmul.f32 %v90, %v12
  %v219 = vmul.f32 %v91, %v12
  %v220 = vmul.f32 %v92, %v12
  %v221 = vmul.f32 %v93, %v12
  %v222 = vmul.f32 %v94, %v12
  %v223 = vmul.f32 %v95, %v12
  %v224 = vmul.f32 %v96, %v12
  %v225 = vmul.f32 %v97, %v12
  %v226 = vmul.f32 %v98, %v12
  %v227 = vmul.f32 %v99, %v12
  %v228 = vmul.f32 %v100, %v12
  %v229 = vmul.f32 %v101, %v12
  %v230 = vmul.f32 %v102, %v12
  %v231 = vmul.f32 %v103, %v12
  %v232 = vmul.f32 %v104, %v12
  %v233 = vmul.f32 %v105, %v12
  %v234 = vmul.f32 %v106, %v12
  %v235 = vmul.f32 %v107, %v12
  %v236 = vmul.f32 %v108, %v12
  %v237 = vmul.f32 %v109, %v12
  %v238 = vmul.f32 %v110, %v12
  %v239 = vmul.f32 %v111, %v12
  %v240 = vmul.f32 %v112, %v12
  %v241 = vmul.f32 %v113, %v12
  %v242 = vmul.f32 %v114, %v12
  %v243 = vmul.f32 %v115, %v12
  %v244 = vmul.f32 %v116, %v12
  %v245 = vmul.f32 %v117, %v12
  %v246 = vmul.f32 %v118, %v12
  %v247 = vmul.f32 %v119, %v12
  %v248 = vmul.f32 %v120, %v12
  %v249 = vmul.f32 %v121, %v12
  %v250 = vmul.f32 %v122, %v12
  %v251 = vmul.f32 %v123, %v12
  %v252 = vmul.f32 %v124, %v12
  %v253 = vmul.f32 %v125, %v12
  %v254 = vmul.f32 %v126, %v12
  %v255 = vmul.f32 %v127, %v12
  %v256 = vmul.f32 %v128, %v12
  %v257 = vmul.f32 %v129, %v12
  %v258 = vmul.f32 %v130, %v12
  %v259 = vmul.f32 %v131, %v12
  %v260 = vmul.f32 %v132, %v12
  %v261 = vmul.f32 %v133, %v12
  %v262 = vmul.f32 %v134, %v12
  %v263 = vmul.f32 %v135, %v12
  %v264 = vmul.f32 %v136, %v12
  %v265 = vmul.f32 %v137, %v12
  %v266 = vmul.f32 %v138, %v12
  %v267 = vmul.f32 %v139, %v12
  %v268 = vmul.f32 %v140, %v12
  %vm269 = vcmask 416768
  %v270 = vsel %vm269, %v141, 0.0
  %271 = vadd.xlane.f32.xlu0 %v270
  %v272 = vpop.xlane.xlu0 %271
  %v273 = vsel %vm269, %v142, 0.0
  %274 = vadd.xlane.f32.xlu0 %v273
  %v275 = vpop.xlane.xlu0 %274
  %v276 = vsel %vm269, %v143, 0.0
  %277 = vadd.xlane.f32.xlu0 %v276
  %v278 = vpop.xlane.xlu0 %277
  %v279 = vsel %vm269, %v144, 0.0
  %280 = vadd.xlane.f32.xlu0 %v279
  %v281 = vpop.xlane.xlu0 %280
  %v282 = vsel %vm269, %v145, 0.0
  %283 = vadd.xlane.f32.xlu0 %v282
  %v284 = vpop.xlane.xlu0 %283
  %v285 = vsel %vm269, %v146, 0.0
  %286 = vadd.xlane.f32.xlu0 %v285
  %v287 = vpop.xlane.xlu0 %286
  %v288 = vsel %vm269, %v147, 0.0
  %289 = vadd.xlane.f32.xlu0 %v288
  %v290 = vpop.xlane.xlu0 %289
  %v291 = vsel %vm269, %v148, 0.0
  %292 = vadd.xlane.f32.xlu0 %v291
  %v293 = vpop.xlane.xlu0 %292
  %v294 = vsel %vm269, %v149, 0.0
  %295 = vadd.xlane.f32.xlu0 %v294
  %v296 = vpop.xlane.xlu0 %295
  %v297 = vsel %vm269, %v150, 0.0
  %298 = vadd.xlane.f32.xlu0 %v297
  %v299 = vpop.xlane.xlu0 %298
  %v300 = vsel %vm269, %v151, 0.0
  %301 = vadd.xlane.f32.xlu0 %v300
  %v302 = vpop.xlane.xlu0 %301
  %v303 = vsel %vm269, %v152, 0.0
  %304 = vadd.xlane.f32.xlu0 %v303
  %v305 = vpop.xlane.xlu0 %304
  %v306 = vsel %vm269, %v153, 0.0
  %307 = vadd.xlane.f32.xlu0 %v306
  %v308 = vpop.xlane.xlu0 %307
  %v309 = vsel %vm269, %v154, 0.0
  %310 = vadd.xlane.f32.xlu0 %v309
  %v311 = vpop.xlane.xlu0 %310
  %v312 = vsel %vm269, %v155, 0.0
  %313 = vadd.xlane.f32.xlu0 %v312
  %v314 = vpop.xlane.xlu0 %313
  %v315 = vsel %vm269, %v156, 0.0
  %316 = vadd.xlane.f32.xlu0 %v315
  %v317 = vpop.xlane.xlu0 %316
  %v318 = vsel %vm269, %v157, 0.0
  %319 = vadd.xlane.f32.xlu0 %v318
  %v320 = vpop.xlane.xlu0 %319
  %v321 = vsel %vm269, %v158, 0.0
  %322 = vadd.xlane.f32.xlu0 %v321
  %v323 = vpop.xlane.xlu0 %322
  %v324 = vsel %vm269, %v159, 0.0
  %325 = vadd.xlane.f32.xlu0 %v324
  %v326 = vpop.xlane.xlu0 %325
  %v327 = vsel %vm269, %v160, 0.0
  %328 = vadd.xlane.f32.xlu0 %v327
  %v329 = vpop.xlane.xlu0 %328
  %v330 = vsel %vm269, %v161, 0.0
  %331 = vadd.xlane.f32.xlu0 %v330
  %v332 = vpop.xlane.xlu0 %331
  %v333 = vsel %vm269, %v162, 0.0
  %334 = vadd.xlane.f32.xlu0 %v333
  %v335 = vpop.xlane.xlu0 %334
  %v336 = vsel %vm269, %v163, 0.0
  %337 = vadd.xlane.f32.xlu0 %v336
  %v338 = vpop.xlane.xlu0 %337
  %v339 = vsel %vm269, %v164, 0.0
  %340 = vadd.xlane.f32.xlu0 %v339
  %v341 = vpop.xlane.xlu0 %340
  %v342 = vsel %vm269, %v165, 0.0
  %343 = vadd.xlane.f32.xlu0 %v342
  %v344 = vpop.xlane.xlu0 %343
  %v345 = vsel %vm269, %v166, 0.0
  %346 = vadd.xlane.f32.xlu0 %v345
  %v347 = vpop.xlane.xlu0 %346
  %v348 = vsel %vm269, %v167, 0.0
  %349 = vadd.xlane.f32.xlu0 %v348
  %v350 = vpop.xlane.xlu0 %349
  %v351 = vsel %vm269, %v168, 0.0
  %352 = vadd.xlane.f32.xlu0 %v351
  %v353 = vpop.xlane.xlu0 %352
  %v354 = vsel %vm269, %v169, 0.0
  %355 = vadd.xlane.f32.xlu0 %v354
  %v356 = vpop.xlane.xlu0 %355
  %v357 = vsel %vm269, %v170, 0.0
  %358 = vadd.xlane.f32.xlu0 %v357
  %v359 = vpop.xlane.xlu0 %358
  %v360 = vsel %vm269, %v171, 0.0
  %361 = vadd.xlane.f32.xlu0 %v360
  %v362 = vpop.xlane.xlu0 %361
  %v363 = vsel %vm269, %v172, 0.0
  %364 = vadd.xlane.f32.xlu0 %v363
  %v365 = vpop.xlane.xlu0 %364
  %v366 = vsel %vm269, %v173, 0.0
  %367 = vadd.xlane.f32.xlu0 %v366
  %v368 = vpop.xlane.xlu0 %367
  %v369 = vsel %vm269, %v174, 0.0
  %370 = vadd.xlane.f32.xlu0 %v369
  %v371 = vpop.xlane.xlu0 %370
  %v372 = vsel %vm269, %v175, 0.0
  %373 = vadd.xlane.f32.xlu0 %v372
  %v374 = vpop.xlane.xlu0 %373
  %v375 = vsel %vm269, %v176, 0.0
  %376 = vadd.xlane.f32.xlu0 %v375
  %v377 = vpop.xlane.xlu0 %376
  %v378 = vsel %vm269, %v177, 0.0
  %379 = vadd.xlane.f32.xlu0 %v378
  %v380 = vpop.xlane.xlu0 %379
  %v381 = vsel %vm269, %v178, 0.0
  %382 = vadd.xlane.f32.xlu0 %v381
  %v383 = vpop.xlane.xlu0 %382
  %v384 = vsel %vm269, %v179, 0.0
  %385 = vadd.xlane.f32.xlu0 %v384
  %v386 = vpop.xlane.xlu0 %385
  %v387 = vsel %vm269, %v180, 0.0
  %388 = vadd.xlane.f32.xlu0 %v387
  %v389 = vpop.xlane.xlu0 %388
  %v390 = vsel %vm269, %v181, 0.0
  %391 = vadd.xlane.f32.xlu0 %v390
  %v392 = vpop.xlane.xlu0 %391
  %v393 = vsel %vm269, %v182, 0.0
  %394 = vadd.xlane.f32.xlu0 %v393
  %v395 = vpop.xlane.xlu0 %394
  %v396 = vsel %vm269, %v183, 0.0
  %397 = vadd.xlane.f32.xlu0 %v396
  %v398 = vpop.xlane.xlu0 %397
  %v399 = vsel %vm269, %v184, 0.0
  %400 = vadd.xlane.f32.xlu0 %v399
  %v401 = vpop.xlane.xlu0 %400
  %v402 = vsel %vm269, %v185, 0.0
  %403 = vadd.xlane.f32.xlu0 %v402
  %v404 = vpop.xlane.xlu0 %403
  %v405 = vsel %vm269, %v186, 0.0
  %406 = vadd.xlane.f32.xlu0 %v405
  %v407 = vpop.xlane.xlu0 %406
  %v408 = vsel %vm269, %v187, 0.0
  %409 = vadd.xlane.f32.xlu0 %v408
  %v410 = vpop.xlane.xlu0 %409
  %v411 = vsel %vm269, %v188, 0.0
  %412 = vadd.xlane.f32.xlu0 %v411
  %v413 = vpop.xlane.xlu0 %412
  %v414 = vsel %vm269, %v189, 0.0
  %415 = vadd.xlane.f32.xlu0 %v414
  %v416 = vpop.xlane.xlu0 %415
  %v417 = vsel %vm269, %v190, 0.0
  %418 = vadd.xlane.f32.xlu0 %v417
  %v419 = vpop.xlane.xlu0 %418
  %v420 = vsel %vm269, %v191, 0.0
  %421 = vadd.xlane.f32.xlu0 %v420
  %v422 = vpop.xlane.xlu0 %421
  %v423 = vsel %vm269, %v192, 0.0
  %424 = vadd.xlane.f32.xlu0 %v423
  %v425 = vpop.xlane.xlu0 %424
  %v426 = vsel %vm269, %v193, 0.0
  %427 = vadd.xlane.f32.xlu0 %v426
  %v428 = vpop.xlane.xlu0 %427
  %v429 = vsel %vm269, %v194, 0.0
  %430 = vadd.xlane.f32.xlu0 %v429
  %v431 = vpop.xlane.xlu0 %430
  %v432 = vsel %vm269, %v195, 0.0
  %433 = vadd.xlane.f32.xlu0 %v432
  %v434 = vpop.xlane.xlu0 %433
  %v435 = vsel %vm269, %v196, 0.0
  %436 = vadd.xlane.f32.xlu0 %v435
  %v437 = vpop.xlane.xlu0 %436
  %v438 = vsel %vm269, %v197, 0.0
  %439 = vadd.xlane.f32.xlu0 %v438
  %v440 = vpop.xlane.xlu0 %439
  %v441 = vsel %vm269, %v198, 0.0
  %442 = vadd.xlane.f32.xlu0 %v441
  %v443 = vpop.xlane.xlu0 %442
  %v444 = vsel %vm269, %v199, 0.0
  %445 = vadd.xlane.f32.xlu0 %v444
  %v446 = vpop.xlane.xlu0 %445
  %v447 = vsel %vm269, %v200, 0.0
  %448 = vadd.xlane.f32.xlu0 %v447
  %v449 = vpop.xlane.xlu0 %448
  %v450 = vsel %vm269, %v201, 0.0
  %451 = vadd.xlane.f32.xlu0 %v450
  %v452 = vpop.xlane.xlu0 %451
  %v453 = vsel %vm269, %v202, 0.0
  %454 = vadd.xlane.f32.xlu0 %v453
  %v455 = vpop.xlane.xlu0 %454
  %v456 = vsel %vm269, %v203, 0.0
  %457 = vadd.xlane.f32.xlu0 %v456
  %v458 = vpop.xlane.xlu0 %457
  %v459 = vsel %vm269, %v204, 0.0
  %460 = vadd.xlane.f32.xlu0 %v459
  %v461 = vpop.xlane.xlu0 %460
  %v462 = vsel %vm269, %v205, 0.0
  %463 = vadd.xlane.f32.xlu0 %v462
  %v464 = vpop.xlane.xlu0 %463
  %v465 = vsel %vm269, %v206, 0.0
  %466 = vadd.xlane.f32.xlu0 %v465
  %v467 = vpop.xlane.xlu0 %466
  %v468 = vsel %vm269, %v207, 0.0
  %469 = vadd.xlane.f32.xlu0 %v468
  %v470 = vpop.xlane.xlu0 %469
  %v471 = vsel %vm269, %v208, 0.0
  %472 = vadd.xlane.f32.xlu0 %v471
  %v473 = vpop.xlane.xlu0 %472
  %v474 = vsel %vm269, %v209, 0.0
  %475 = vadd.xlane.f32.xlu0 %v474
  %v476 = vpop.xlane.xlu0 %475
  %v477 = vsel %vm269, %v210, 0.0
  %478 = vadd.xlane.f32.xlu0 %v477
  %v479 = vpop.xlane.xlu0 %478
  %v480 = vsel %vm269, %v211, 0.0
  %481 = vadd.xlane.f32.xlu0 %v480
  %v482 = vpop.xlane.xlu0 %481
  %v483 = vsel %vm269, %v212, 0.0
  %484 = vadd.xlane.f32.xlu0 %v483
  %v485 = vpop.xlane.xlu0 %484
  %v486 = vsel %vm269, %v213, 0.0
  %487 = vadd.xlane.f32.xlu0 %v486
  %v488 = vpop.xlane.xlu0 %487
  %v489 = vsel %vm269, %v214, 0.0
  %490 = vadd.xlane.f32.xlu0 %v489
  %v491 = vpop.xlane.xlu0 %490
  %v492 = vsel %vm269, %v215, 0.0
  %493 = vadd.xlane.f32.xlu0 %v492
  %v494 = vpop.xlane.xlu0 %493
  %v495 = vsel %vm269, %v216, 0.0
  %496 = vadd.xlane.f32.xlu0 %v495
  %v497 = vpop.xlane.xlu0 %496
  %v498 = vsel %vm269, %v217, 0.0
  %499 = vadd.xlane.f32.xlu0 %v498
  %v500 = vpop.xlane.xlu0 %499
  %v501 = vsel %vm269, %v218, 0.0
  %502 = vadd.xlane.f32.xlu0 %v501
  %v503 = vpop.xlane.xlu0 %502
  %v504 = vsel %vm269, %v219, 0.0
  %505 = vadd.xlane.f32.xlu0 %v504
  %v506 = vpop.xlane.xlu0 %505
  %v507 = vsel %vm269, %v220, 0.0
  %508 = vadd.xlane.f32.xlu0 %v507
  %v509 = vpop.xlane.xlu0 %508
  %v510 = vsel %vm269, %v221, 0.0
  %511 = vadd.xlane.f32.xlu0 %v510
  %v512 = vpop.xlane.xlu0 %511
  %v513 = vsel %vm269, %v222, 0.0
  %514 = vadd.xlane.f32.xlu0 %v513
  %v515 = vpop.xlane.xlu0 %514
  %v516 = vsel %vm269, %v223, 0.0
  %517 = vadd.xlane.f32.xlu0 %v516
  %v518 = vpop.xlane.xlu0 %517
  %v519 = vsel %vm269, %v224, 0.0
  %520 = vadd.xlane.f32.xlu0 %v519
  %v521 = vpop.xlane.xlu0 %520
  %v522 = vsel %vm269, %v225, 0.0
  %523 = vadd.xlane.f32.xlu0 %v522
  %v524 = vpop.xlane.xlu0 %523
  %v525 = vsel %vm269, %v226, 0.0
  %526 = vadd.xlane.f32.xlu0 %v525
  %v527 = vpop.xlane.xlu0 %526
  %v528 = vsel %vm269, %v227, 0.0
  %529 = vadd.xlane.f32.xlu0 %v528
  %v530 = vpop.xlane.xlu0 %529
  %v531 = vsel %vm269, %v228, 0.0
  %532 = vadd.xlane.f32.xlu0 %v531
  %v533 = vpop.xlane.xlu0 %532
  %v534 = vsel %vm269, %v229, 0.0
  %535 = vadd.xlane.f32.xlu0 %v534
  %v536 = vpop.xlane.xlu0 %535
  %v537 = vsel %vm269, %v230, 0.0
  %538 = vadd.xlane.f32.xlu0 %v537
  %v539 = vpop.xlane.xlu0 %538
  %v540 = vsel %vm269, %v231, 0.0
  %541 = vadd.xlane.f32.xlu0 %v540
  %v542 = vpop.xlane.xlu0 %541
  %v543 = vsel %vm269, %v232, 0.0
  %544 = vadd.xlane.f32.xlu0 %v543
  %v545 = vpop.xlane.xlu0 %544
  %v546 = vsel %vm269, %v233, 0.0
  %547 = vadd.xlane.f32.xlu0 %v546
  %v548 = vpop.xlane.xlu0 %547
  %v549 = vsel %vm269, %v234, 0.0
  %550 = vadd.xlane.f32.xlu0 %v549
  %v551 = vpop.xlane.xlu0 %550
  %v552 = vsel %vm269, %v235, 0.0
  %553 = vadd.xlane.f32.xlu0 %v552
  %v554 = vpop.xlane.xlu0 %553
  %v555 = vsel %vm269, %v236, 0.0
  %556 = vadd.xlane.f32.xlu0 %v555
  %v557 = vpop.xlane.xlu0 %556
  %v558 = vsel %vm269, %v237, 0.0
  %559 = vadd.xlane.f32.xlu0 %v558
  %v560 = vpop.xlane.xlu0 %559
  %v561 = vsel %vm269, %v238, 0.0
  %562 = vadd.xlane.f32.xlu0 %v561
  %v563 = vpop.xlane.xlu0 %562
  %v564 = vsel %vm269, %v239, 0.0
  %565 = vadd.xlane.f32.xlu0 %v564
  %v566 = vpop.xlane.xlu0 %565
  %v567 = vsel %vm269, %v240, 0.0
  %568 = vadd.xlane.f32.xlu0 %v567
  %v569 = vpop.xlane.xlu0 %568
  %v570 = vsel %vm269, %v241, 0.0
  %571 = vadd.xlane.f32.xlu0 %v570
  %v572 = vpop.xlane.xlu0 %571
  %v573 = vsel %vm269, %v242, 0.0
  %574 = vadd.xlane.f32.xlu0 %v573
  %v575 = vpop.xlane.xlu0 %574
  %v576 = vsel %vm269, %v243, 0.0
  %577 = vadd.xlane.f32.xlu0 %v576
  %v578 = vpop.xlane.xlu0 %577
  %v579 = vsel %vm269, %v244, 0.0
  %580 = vadd.xlane.f32.xlu0 %v579
  %v581 = vpop.xlane.xlu0 %580
  %v582 = vsel %vm269, %v245, 0.0
  %583 = vadd.xlane.f32.xlu0 %v582
  %v584 = vpop.xlane.xlu0 %583
  %v585 = vsel %vm269, %v246, 0.0
  %586 = vadd.xlane.f32.xlu0 %v585
  %v587 = vpop.xlane.xlu0 %586
  %v588 = vsel %vm269, %v247, 0.0
  %589 = vadd.xlane.f32.xlu0 %v588
  %v590 = vpop.xlane.xlu0 %589
  %v591 = vsel %vm269, %v248, 0.0
  %592 = vadd.xlane.f32.xlu0 %v591
  %v593 = vpop.xlane.xlu0 %592
  %v594 = vsel %vm269, %v249, 0.0
  %595 = vadd.xlane.f32.xlu0 %v594
  %v596 = vpop.xlane.xlu0 %595
  %v597 = vsel %vm269, %v250, 0.0
  %598 = vadd.xlane.f32.xlu0 %v597
  %v599 = vpop.xlane.xlu0 %598
  %v600 = vsel %vm269, %v251, 0.0
  %601 = vadd.xlane.f32.xlu0 %v600
  %v602 = vpop.xlane.xlu0 %601
  %v603 = vsel %vm269, %v252, 0.0
  %604 = vadd.xlane.f32.xlu0 %v603
  %v605 = vpop.xlane.xlu0 %604
  %v606 = vsel %vm269, %v253, 0.0
  %607 = vadd.xlane.f32.xlu0 %v606
  %v608 = vpop.xlane.xlu0 %607
  %v609 = vsel %vm269, %v254, 0.0
  %610 = vadd.xlane.f32.xlu0 %v609
  %v611 = vpop.xlane.xlu0 %610
  %v612 = vsel %vm269, %v255, 0.0
  %613 = vadd.xlane.f32.xlu0 %v612
  %v614 = vpop.xlane.xlu0 %613
  %v615 = vsel %vm269, %v256, 0.0
  %616 = vadd.xlane.f32.xlu0 %v615
  %v617 = vpop.xlane.xlu0 %616
  %v618 = vsel %vm269, %v257, 0.0
  %619 = vadd.xlane.f32.xlu0 %v618
  %v620 = vpop.xlane.xlu0 %619
  %v621 = vsel %vm269, %v258, 0.0
  %622 = vadd.xlane.f32.xlu0 %v621
  %v623 = vpop.xlane.xlu0 %622
  %v624 = vsel %vm269, %v259, 0.0
  %625 = vadd.xlane.f32.xlu0 %v624
  %v626 = vpop.xlane.xlu0 %625
  %v627 = vsel %vm269, %v260, 0.0
  %628 = vadd.xlane.f32.xlu0 %v627
  %v629 = vpop.xlane.xlu0 %628
  %v630 = vsel %vm269, %v261, 0.0
  %631 = vadd.xlane.f32.xlu0 %v630
  %v632 = vpop.xlane.xlu0 %631
  %v633 = vsel %vm269, %v262, 0.0
  %634 = vadd.xlane.f32.xlu0 %v633
  %v635 = vpop.xlane.xlu0 %634
  %v636 = vsel %vm269, %v263, 0.0
  %637 = vadd.xlane.f32.xlu0 %v636
  %v638 = vpop.xlane.xlu0 %637
  %v639 = vsel %vm269, %v264, 0.0
  %640 = vadd.xlane.f32.xlu0 %v639
  %v641 = vpop.xlane.xlu0 %640
  %v642 = vsel %vm269, %v265, 0.0
  %643 = vadd.xlane.f32.xlu0 %v642
  %v644 = vpop.xlane.xlu0 %643
  %v645 = vsel %vm269, %v266, 0.0
  %646 = vadd.xlane.f32.xlu0 %v645
  %v647 = vpop.xlane.xlu0 %646
  %v648 = vsel %vm269, %v267, 0.0
  %649 = vadd.xlane.f32.xlu0 %v648
  %v650 = vpop.xlane.xlu0 %649
  %v651 = vsel %vm269, %v268, 0.0
  %652 = vadd.xlane.f32.xlu0 %v651
  %v653 = vpop.xlane.xlu0 %652
  %vm654 = vcmask 7168
  %655 = vst.msk [vmem:[%s1] sm:$0xff] %vm654, %v272
  %656 = vst.msk [vmem:[%s1 + $0x8] sm:$0xff] %vm654, %v275
  %657 = vst.msk [vmem:[%s1 + $0x10] sm:$0xff] %vm654, %v278
  %658 = vst.msk [vmem:[%s1 + $0x18] sm:$0xff] %vm654, %v281
  %659 = vst.msk [vmem:[%s1 + $0x20] sm:$0xff] %vm654, %v284
  %660 = vst.msk [vmem:[%s1 + $0x28] sm:$0xff] %vm654, %v287
  %661 = vst.msk [vmem:[%s1 + $0x30] sm:$0xff] %vm654, %v290
  %662 = vst.msk [vmem:[%s1 + $0x38] sm:$0xff] %vm654, %v293
  %663 = vst.msk [vmem:[%s1 + $0x40] sm:$0xff] %vm654, %v296
  %664 = vst.msk [vmem:[%s1 + $0x48] sm:$0xff] %vm654, %v299
  %665 = vst.msk [vmem:[%s1 + $0x50] sm:$0xff] %vm654, %v302
  %666 = vst.msk [vmem:[%s1 + $0x58] sm:$0xff] %vm654, %v305
  %667 = vst.msk [vmem:[%s1 + $0x60] sm:$0xff] %vm654, %v308
  %668 = vst.msk [vmem:[%s1 + $0x68] sm:$0xff] %vm654, %v311
  %669 = vst.msk [vmem:[%s1 + $0x70] sm:$0xff] %vm654, %v314
  %670 = vst.msk [vmem:[%s1 + $0x78] sm:$0xff] %vm654, %v317
  %671 = vst.msk [vmem:[%s1 + $0x80] sm:$0xff] %vm654, %v320
  %672 = vst.msk [vmem:[%s1 + $0x88] sm:$0xff] %vm654, %v323
  %673 = vst.msk [vmem:[%s1 + $0x90] sm:$0xff] %vm654, %v326
  %674 = vst.msk [vmem:[%s1 + $0x98] sm:$0xff] %vm654, %v329
  %675 = vst.msk [vmem:[%s1 + $0xa0] sm:$0xff] %vm654, %v332
  %676 = vst.msk [vmem:[%s1 + $0xa8] sm:$0xff] %vm654, %v335
  %677 = vst.msk [vmem:[%s1 + $0xb0] sm:$0xff] %vm654, %v338
  %678 = vst.msk [vmem:[%s1 + $0xb8] sm:$0xff] %vm654, %v341
  %679 = vst.msk [vmem:[%s1 + $0xc0] sm:$0xff] %vm654, %v344
  %680 = vst.msk [vmem:[%s1 + $0xc8] sm:$0xff] %vm654, %v347
  %681 = vst.msk [vmem:[%s1 + $0xd0] sm:$0xff] %vm654, %v350
  %682 = vst.msk [vmem:[%s1 + $0xd8] sm:$0xff] %vm654, %v353
  %683 = vst.msk [vmem:[%s1 + $0xe0] sm:$0xff] %vm654, %v356
  %684 = vst.msk [vmem:[%s1 + $0xe8] sm:$0xff] %vm654, %v359
  %685 = vst.msk [vmem:[%s1 + $0xf0] sm:$0xff] %vm654, %v362
  %686 = vst.msk [vmem:[%s1 + $0xf8] sm:$0xff] %vm654, %v365
  %687 = vst.msk [vmem:[%s1 + $0x100] sm:$0xff] %vm654, %v368
  %688 = vst.msk [vmem:[%s1 + $0x108] sm:$0xff] %vm654, %v371
  %689 = vst.msk [vmem:[%s1 + $0x110] sm:$0xff] %vm654, %v374
  %690 = vst.msk [vmem:[%s1 + $0x118] sm:$0xff] %vm654, %v377
  %691 = vst.msk [vmem:[%s1 + $0x120] sm:$0xff] %vm654, %v380
  %692 = vst.msk [vmem:[%s1 + $0x128] sm:$0xff] %vm654, %v383
  %693 = vst.msk [vmem:[%s1 + $0x130] sm:$0xff] %vm654, %v386
  %694 = vst.msk [vmem:[%s1 + $0x138] sm:$0xff] %vm654, %v389
  %695 = vst.msk [vmem:[%s1 + $0x140] sm:$0xff] %vm654, %v392
  %696 = vst.msk [vmem:[%s1 + $0x148] sm:$0xff] %vm654, %v395
  %697 = vst.msk [vmem:[%s1 + $0x150] sm:$0xff] %vm654, %v398
  %698 = vst.msk [vmem:[%s1 + $0x158] sm:$0xff] %vm654, %v401
  %699 = vst.msk [vmem:[%s1 + $0x160] sm:$0xff] %vm654, %v404
  %700 = vst.msk [vmem:[%s1 + $0x168] sm:$0xff] %vm654, %v407
  %701 = vst.msk [vmem:[%s1 + $0x170] sm:$0xff] %vm654, %v410
  %702 = vst.msk [vmem:[%s1 + $0x178] sm:$0xff] %vm654, %v413
  %703 = vst.msk [vmem:[%s1 + $0x180] sm:$0xff] %vm654, %v416
  %704 = vst.msk [vmem:[%s1 + $0x188] sm:$0xff] %vm654, %v419
  %705 = vst.msk [vmem:[%s1 + $0x190] sm:$0xff] %vm654, %v422
  %706 = vst.msk [vmem:[%s1 + $0x198] sm:$0xff] %vm654, %v425
  %707 = vst.msk [vmem:[%s1 + $0x1a0] sm:$0xff] %vm654, %v428
  %708 = vst.msk [vmem:[%s1 + $0x1a8] sm:$0xff] %vm654, %v431
  %709 = vst.msk [vmem:[%s1 + $0x1b0] sm:$0xff] %vm654, %v434
  %710 = vst.msk [vmem:[%s1 + $0x1b8] sm:$0xff] %vm654, %v437
  %711 = vst.msk [vmem:[%s1 + $0x1c0] sm:$0xff] %vm654, %v440
  %712 = vst.msk [vmem:[%s1 + $0x1c8] sm:$0xff] %vm654, %v443
  %713 = vst.msk [vmem:[%s1 + $0x1d0] sm:$0xff] %vm654, %v446
  %714 = vst.msk [vmem:[%s1 + $0x1d8] sm:$0xff] %vm654, %v449
  %715 = vst.msk [vmem:[%s1 + $0x1e0] sm:$0xff] %vm654, %v452
  %716 = vst.msk [vmem:[%s1 + $0x1e8] sm:$0xff] %vm654, %v455
  %717 = vst.msk [vmem:[%s1 + $0x1f0] sm:$0xff] %vm654, %v458
  %718 = vst.msk [vmem:[%s1 + $0x1f8] sm:$0xff] %vm654, %v461
  %719 = vst.msk [vmem:[%s1 + $0x200] sm:$0xff] %vm654, %v464
  %720 = vst.msk [vmem:[%s1 + $0x208] sm:$0xff] %vm654, %v467
  %721 = vst.msk [vmem:[%s1 + $0x210] sm:$0xff] %vm654, %v470
  %722 = vst.msk [vmem:[%s1 + $0x218] sm:$0xff] %vm654, %v473
  %723 = vst.msk [vmem:[%s1 + $0x220] sm:$0xff] %vm654, %v476
  %724 = vst.msk [vmem:[%s1 + $0x228] sm:$0xff] %vm654, %v479
  %725 = vst.msk [vmem:[%s1 + $0x230] sm:$0xff] %vm654, %v482
  %726 = vst.msk [vmem:[%s1 + $0x238] sm:$0xff] %vm654, %v485
  %727 = vst.msk [vmem:[%s1 + $0x240] sm:$0xff] %vm654, %v488
  %728 = vst.msk [vmem:[%s1 + $0x248] sm:$0xff] %vm654, %v491
  %729 = vst.msk [vmem:[%s1 + $0x250] sm:$0xff] %vm654, %v494
  %730 = vst.msk [vmem:[%s1 + $0x258] sm:$0xff] %vm654, %v497
  %731 = vst.msk [vmem:[%s1 + $0x260] sm:$0xff] %vm654, %v500
  %732 = vst.msk [vmem:[%s1 + $0x268] sm:$0xff] %vm654, %v503
  %733 = vst.msk [vmem:[%s1 + $0x270] sm:$0xff] %vm654, %v506
  %734 = vst.msk [vmem:[%s1 + $0x278] sm:$0xff] %vm654, %v509
  %735 = vst.msk [vmem:[%s1 + $0x280] sm:$0xff] %vm654, %v512
  %736 = vst.msk [vmem:[%s1 + $0x288] sm:$0xff] %vm654, %v515
  %737 = vst.msk [vmem:[%s1 + $0x290] sm:$0xff] %vm654, %v518
  %738 = vst.msk [vmem:[%s1 + $0x298] sm:$0xff] %vm654, %v521
  %739 = vst.msk [vmem:[%s1 + $0x2a0] sm:$0xff] %vm654, %v524
  %740 = vst.msk [vmem:[%s1 + $0x2a8] sm:$0xff] %vm654, %v527
  %741 = vst.msk [vmem:[%s1 + $0x2b0] sm:$0xff] %vm654, %v530
  %742 = vst.msk [vmem:[%s1 + $0x2b8] sm:$0xff] %vm654, %v533
  %743 = vst.msk [vmem:[%s1 + $0x2c0] sm:$0xff] %vm654, %v536
  %744 = vst.msk [vmem:[%s1 + $0x2c8] sm:$0xff] %vm654, %v539
  %745 = vst.msk [vmem:[%s1 + $0x2d0] sm:$0xff] %vm654, %v542
  %746 = vst.msk [vmem:[%s1 + $0x2d8] sm:$0xff] %vm654, %v545
  %747 = vst.msk [vmem:[%s1 + $0x2e0] sm:$0xff] %vm654, %v548
  %748 = vst.msk [vmem:[%s1 + $0x2e8] sm:$0xff] %vm654, %v551
  %749 = vst.msk [vmem:[%s1 + $0x2f0] sm:$0xff] %vm654, %v554
  %750 = vst.msk [vmem:[%s1 + $0x2f8] sm:$0xff] %vm654, %v557
  %751 = vst.msk [vmem:[%s1 + $0x300] sm:$0xff] %vm654, %v560
  %752 = vst.msk [vmem:[%s1 + $0x308] sm:$0xff] %vm654, %v563
  %753 = vst.msk [vmem:[%s1 + $0x310] sm:$0xff] %vm654, %v566
  %754 = vst.msk [vmem:[%s1 + $0x318] sm:$0xff] %vm654, %v569
  %755 = vst.msk [vmem:[%s1 + $0x320] sm:$0xff] %vm654, %v572
  %756 = vst.msk [vmem:[%s1 + $0x328] sm:$0xff] %vm654, %v575
  %757 = vst.msk [vmem:[%s1 + $0x330] sm:$0xff] %vm654, %v578
  %758 = vst.msk [vmem:[%s1 + $0x338] sm:$0xff] %vm654, %v581
  %759 = vst.msk [vmem:[%s1 + $0x340] sm:$0xff] %vm654, %v584
  %760 = vst.msk [vmem:[%s1 + $0x348] sm:$0xff] %vm654, %v587
  %761 = vst.msk [vmem:[%s1 + $0x350] sm:$0xff] %vm654, %v590
  %762 = vst.msk [vmem:[%s1 + $0x358] sm:$0xff] %vm654, %v593
  %763 = vst.msk [vmem:[%s1 + $0x360] sm:$0xff] %vm654, %v596
  %764 = vst.msk [vmem:[%s1 + $0x368] sm:$0xff] %vm654, %v599
  %765 = vst.msk [vmem:[%s1 + $0x370] sm:$0xff] %vm654, %v602
  %766 = vst.msk [vmem:[%s1 + $0x378] sm:$0xff] %vm654, %v605
  %767 = vst.msk [vmem:[%s1 + $0x380] sm:$0xff] %vm654, %v608
  %768 = vst.msk [vmem:[%s1 + $0x388] sm:$0xff] %vm654, %v611
  %769 = vst.msk [vmem:[%s1 + $0x390] sm:$0xff] %vm654, %v614
  %770 = vst.msk [vmem:[%s1 + $0x398] sm:$0xff] %vm654, %v617
  %771 = vst.msk [vmem:[%s1 + $0x3a0] sm:$0xff] %vm654, %v620
  %772 = vst.msk [vmem:[%s1 + $0x3a8] sm:$0xff] %vm654, %v623
  %773 = vst.msk [vmem:[%s1 + $0x3b0] sm:$0xff] %vm654, %v626
  %774 = vst.msk [vmem:[%s1 + $0x3b8] sm:$0xff] %vm654, %v629
  %775 = vst.msk [vmem:[%s1 + $0x3c0] sm:$0xff] %vm654, %v632
  %776 = vst.msk [vmem:[%s1 + $0x3c8] sm:$0xff] %vm654, %v635
  %777 = vst.msk [vmem:[%s1 + $0x3d0] sm:$0xff] %vm654, %v638
  %778 = vst.msk [vmem:[%s1 + $0x3d8] sm:$0xff] %vm654, %v641
  %779 = vst.msk [vmem:[%s1 + $0x3e0] sm:$0xff] %vm654, %v644
  %780 = vst.msk [vmem:[%s1 + $0x3e8] sm:$0xff] %vm654, %v647
  %781 = vst.msk [vmem:[%s1 + $0x3f0] sm:$0xff] %vm654, %v650
  %782 = vst.msk [vmem:[%s1 + $0x3f8] sm:$0xff] %vm654, %v653
  // Predicated region
  $region6: #{tpu_custom_call.1} parent=0 // pred_check
    _
  $region7: #{tpu_custom_call.1} parent=0 // pred_check_branch
    %784 = sbr.rel (0) target = $region9
  $region8: #{tpu_custom_call.1} parent=0 // pred_region
    _
  $region9: #{tpu_custom_call.1} parent=0 // pred_fallthru
    _
  // Predicated region
  $region10: #{tpu_custom_call.1} parent=0 // pred_check
    _
  $region11: #{tpu_custom_call.1} parent=0 // pred_check_branch
    %786 = sbr.rel (0) target = $region13
  $region12: #{tpu_custom_call.1} parent=0 // pred_region
    _
  $region13: #{tpu_custom_call.1} parent=0 // pred_fallthru
    _

</llo_original>
